<compile_context>
chip_gen: v6e
topology: v6e:2x2x1
jax: 0.10.0
libtpu: 0.0.40
codegen_flags: <defaults>
</compile_context>

<pallas_src>
import math

import jax
import jax.numpy as jnp
from jax.experimental import pallas as pl
from jax.experimental.pallas import tpu as pltpu


def _round_up(x, m):
    return (x + m - 1) // m * m


# ----------------------------- Pallas kernels --------------------------------

def _conv1x1_kernel(x_ref, w_ref, o_ref):
    o_ref[...] = jnp.dot(x_ref[...], w_ref[...],
                         preferred_element_type=jnp.float32)


def _gated_layer_kernel(x01_ref, wfg_ref, wo_ref, o_ref):
    # x01 = [x_t | x_{t+1}] channel-concat of the two k=2 conv taps.
    cres = x01_ref.shape[1] // 2
    cdil = wfg_ref.shape[1] // 2
    x01 = x01_ref[...]
    # one MXU pass produces the filter||gate pre-activations
    fg = jnp.dot(x01, wfg_ref[...], preferred_element_type=jnp.float32)
    z = jnp.tanh(fg[:, :cdil]) * jax.nn.sigmoid(fg[:, cdil:])
    # one MXU pass produces [z@Wr + x_{t+1} | z@Ws]; the residual add is folded
    # into Wo via an appended identity block (skip cols only on the last layer).
    zx = jnp.concatenate([z, x01[:, cres:]], axis=-1)
    o_ref[...] = jnp.dot(zx, wo_ref[...], preferred_element_type=jnp.float32)


def _head_kernel(x_ref, w1_ref, b1_ref, w2_ref, b2_ref, o_ref):
    # relu(x_skip) -> end_conv_1 (+b) -> relu -> end_conv_2 (+b), fused.
    h = jnp.maximum(x_ref[...], 0.0)
    h = jnp.dot(h, w1_ref[...], preferred_element_type=jnp.float32) + b1_ref[...]
    h = jnp.maximum(h, 0.0)
    o_ref[...] = (jnp.dot(h, w2_ref[...], preferred_element_type=jnp.float32)
                  + b2_ref[...])


# ----------------------------- tiling helpers --------------------------------

_MAX_TM = 1024  # rows per tile; at most a few hundred KB of VMEM per operand

_PARALLEL = pltpu.CompilerParams(dimension_semantics=("parallel",))


def _row_tiling(m):
    """Row-tile size and padded row count.  Large tiles (amortize the ~0.35us
    per-grid-step overhead) but >= 2 grid steps when possible for v7x's 2 TCs."""
    mp = _round_up(max(m, 8), 8)
    tm = min(_MAX_TM, _round_up((mp + 1) // 2, 8))
    mp = _round_up(mp, tm)
    return tm, mp


def _pad_rows(x, mp):
    m = x.shape[0]
    if mp == m:
        return x
    return jnp.pad(x, ((0, mp - m), (0, 0)))


# ----------------------------- kernel wrappers --------------------------------

def conv1x1_rows(x2d, w):
    """Row-wise 1x1 conv (no bias): y = x @ w."""
    m, cin = x2d.shape
    cout = w.shape[1]
    tm, mp = _row_tiling(m)
    out = pl.pallas_call(
        _conv1x1_kernel,
        out_shape=jax.ShapeDtypeStruct((mp, cout), jnp.float32),
        grid=(mp // tm,),
        in_specs=[pl.BlockSpec((tm, cin), lambda i: (i, 0)),
                  pl.BlockSpec((cin, cout), lambda i: (0, 0))],
        out_specs=pl.BlockSpec((tm, cout), lambda i: (i, 0)),
        compiler_params=_PARALLEL,
    )(_pad_rows(x2d, mp), w)
    return out[:m]


def gated_layer_rows(x01, wfg, wo):
    """One WaveNet layer on the time-major slab: fused gate matmul + fused
    residual/skip matmul.  x01: (rows, 2*C_res)."""
    m, cin = x01.shape
    cout = wo.shape[1]
    tm, mp = _row_tiling(m)
    out = pl.pallas_call(
        _gated_layer_kernel,
        out_shape=jax.ShapeDtypeStruct((mp, cout), jnp.float32),
        grid=(mp // tm,),
        in_specs=[pl.BlockSpec((tm, cin), lambda i: (i, 0)),
                  pl.BlockSpec(wfg.shape, lambda i: (0, 0)),
                  pl.BlockSpec(wo.shape, lambda i: (0, 0))],
        out_specs=pl.BlockSpec((tm, cout), lambda i: (i, 0)),
        compiler_params=_PARALLEL,
    )(_pad_rows(x01, mp), wfg, wo)
    return out[:m]


def head_rows(x2d, w1, b1, w2, b2):
    """Fused output head over rows."""
    m, cin = x2d.shape
    cmid = w1.shape[1]
    cout = w2.shape[1]
    tm, mp = _row_tiling(m)
    out = pl.pallas_call(
        _head_kernel,
        out_shape=jax.ShapeDtypeStruct((mp, cout), jnp.float32),
        grid=(mp // tm,),
        in_specs=[pl.BlockSpec((tm, cin), lambda i: (i, 0)),
                  pl.BlockSpec((cin, cmid), lambda i: (0, 0)),
                  pl.BlockSpec((1, cmid), lambda i: (0, 0)),
                  pl.BlockSpec((cmid, cout), lambda i: (0, 0)),
                  pl.BlockSpec((1, cout), lambda i: (0, 0))],
        out_specs=pl.BlockSpec((tm, cout), lambda i: (i, 0)),
        compiler_params=_PARALLEL,
    )(_pad_rows(x2d, mp), w1, b1, w2, b2)
    return out[:m]


# ----------------------------- dilate (bookkeeping only) ---------------------

def _dilate_bookkeeping(n, l, dilation, init_dilation):
    """pytorch-wavenet dilate() on a time-major slab is a pure relabeling of
    (n, l) plus possibly a block of zero rows prepended (pad_start=True).
    Returns (n_dilated, l_dilated, zero_rows_to_prepend)."""
    if dilation == init_dilation:
        return n, l, 0
    new_l = -(-(l * init_dilation) // dilation) * dilation // init_dilation
    pad_rows = (new_l - l) * n
    l_d = new_l * init_dilation // dilation
    n_d = n * dilation // init_dilation
    return n_d, l_d, pad_rows


# ----------------------------- model ------------------------------------------

def wavenet_dilations(layers, blocks):
    dilations = []
    init_dilation = 1
    for _ in range(blocks):
        new_dilation = 1
        for _ in range(layers):
            dilations.append((new_dilation, init_dilation))
            init_dilation = new_dilation
            new_dilation *= 2
    return dilations


def build_wavenet_params(key, *, dilations, dilation_channels, residual_channels,
                         skip_channels, end_channels, classes, kernel_size):
    n_layers = len(dilations)

    def uinit(k, shape, fan):
        bound = 1.0 / math.sqrt(fan)
        return jax.random.uniform(k, shape, jnp.float32, -bound, bound)

    keys = iter(jax.random.split(key, 8 + 6 * n_layers))
    params = {
        'start_w': uinit(next(keys), (classes, residual_channels), classes),
        'layers': [],
    }
    fan2 = residual_channels * kernel_size
    eye_res = jnp.eye(residual_channels, dtype=jnp.float32)
    for li in range(n_layers):
        wf0 = uinit(next(keys), (residual_channels, dilation_channels), fan2)
        wf1 = uinit(next(keys), (residual_channels, dilation_channels), fan2)
        wg0 = uinit(next(keys), (residual_channels, dilation_channels), fan2)
        wg1 = uinit(next(keys), (residual_channels, dilation_channels), fan2)
        wr = uinit(next(keys), (dilation_channels, residual_channels),
                   dilation_channels)
        ws = uinit(next(keys), (dilation_channels, skip_channels),
                   dilation_channels)
        # fused gate weight: [x0 | x1] @ [[wf0, wg0], [wf1, wg1]] = [f_pre | g_pre]
        wfg = jnp.concatenate(
            [jnp.concatenate([wf0, wg0], axis=1),
             jnp.concatenate([wf1, wg1], axis=1)], axis=0)
        if li == n_layers - 1:
            # [z | x1] @ [[wr, ws], [I, 0]] = [z@wr + x1 | z@ws]
            wo = jnp.concatenate(
                [jnp.concatenate([wr, ws], axis=1),
                 jnp.concatenate(
                     [eye_res,
                      jnp.zeros((residual_channels, skip_channels), jnp.float32)],
                     axis=1)], axis=0)
        else:
            # earlier layers' skip outputs are discarded by the reference module
            wo = jnp.concatenate([wr, eye_res], axis=0)
        params['layers'].append({'wfg': wfg, 'wo': wo})

    params['end1_w'] = uinit(next(keys), (skip_channels, end_channels),
                             skip_channels)
    b1 = 1.0 / math.sqrt(skip_channels)
    params['end1_b'] = jax.random.uniform(next(keys), (1, end_channels),
                                          jnp.float32, -b1, b1)
    params['end2_w'] = uinit(next(keys), (end_channels, classes), end_channels)
    b2 = 1.0 / math.sqrt(end_channels)
    params['end2_b'] = jax.random.uniform(next(keys), (1, classes),
                                          jnp.float32, -b2, b2)
    return params


def wavenet_forward(params, x_input, cfg):
    """x_input: (N, classes, L) NCL like the PyTorch module.
    Returns (N * output_length, classes)."""
    assert cfg['kernel_size'] == 2
    N, classes, L = x_input.shape
    dilations = cfg['dilations']
    cres = cfg['residual_channels']
    t = cfg['output_length']

    # one-time conversion to the time-major channels-last slab: row = time*N + b
    slab = jnp.transpose(x_input, (2, 0, 1)).reshape(L * N, classes)
    slab = conv1x1_rows(slab, params['start_w'])             # start_conv (no bias)

    n, l = N, L
    out_slab = None
    for i, (dilation, init_dilation) in enumerate(dilations):
        p = params['layers'][i]
        n_d, l_d, pad_rows = _dilate_bookkeeping(n, l, dilation, init_dilation)
        if pad_rows:
            slab = jnp.pad(slab, ((pad_rows, 0), (0, 0)))    # dilate() pad_start
        shift = n_d                                          # +1 time step in rows
        m = (l_d - 1) * n_d                                  # rows after k=2 conv
        # both conv taps as one lane-denser operand (slice+concat fused by XLA)
        x01 = jnp.concatenate([slab[:m], slab[shift:shift + m]], axis=-1)
        out_slab = gated_layer_rows(x01, p['wfg'], p['wo'])
        slab = out_slab[:, :cres]                            # residual for next layer
        n, l = n_d, l_d - 1

    # reference-module quirk: `skip` is never updated inside the loop, so only
    # the LAST layer's skip-conv output reaches the output head.
    skip = out_slab[:, cres:]
    dilation_last = dilations[-1][0]
    if l != 1:
        # x_s = dilate(z, 1, init_dilation=dilation): identity on the slab,
        # only the (n, l) labels change.
        n_s = n // dilation_last
    else:
        n_s = n

    # fused output head, applied only to the last `output_length` time steps
    rows = t * n_s
    out = head_rows(skip[-rows:], params['end1_w'], params['end1_b'],
                    params['end2_w'], params['end2_b'])      # (t*n_s, classes)
    # time-major (t, n) rows -> PyTorch's batch-major (n, t) row ordering
    out = out.reshape(t, n_s, classes).transpose(1, 0, 2).reshape(n_s * t, classes)
    return out


# TODO(synk): generate_fast / DilatedQueue incremental generation is a stateful
# host-side sampling loop outside forward(); not implemented as a kernel.

if __name__ == "__main__":
    cfg = dict(layers=2, blocks=2, dilation_channels=16, residual_channels=16,
               skip_channels=32, end_channels=32, classes=32, output_length=4,
               kernel_size=2)
    cfg['dilations'] = wavenet_dilations(cfg['layers'], cfg['blocks'])

    key = jax.random.PRNGKey(0)
    pkey, xkey = jax.random.split(key)
    params = build_wavenet_params(
        pkey, dilations=cfg['dilations'],
        dilation_channels=cfg['dilation_channels'],
        residual_channels=cfg['residual_channels'],
        skip_channels=cfg['skip_channels'], end_channels=cfg['end_channels'],
        classes=cfg['classes'], kernel_size=cfg['kernel_size'])

    N, L = 2, 16
    x_input = jax.random.normal(xkey, (N, cfg['classes'], L), jnp.float32)

    fwd = jax.jit(lambda p, x: wavenet_forward(p, x, cfg))
    out = jax.block_until_ready(fwd(params, x_input))
    assert out.shape == (N * cfg['output_length'], cfg['classes']), out.shape
    assert bool(jnp.all(jnp.isfinite(out)))
    print("KERNEL_OK")
</pallas_src>

<mosaic_0001>
module attributes {stable_mosaic.version = 11 : i64} {
  func.func @_conv1x1_kernel(%arg0: i32, %arg1: memref<16x32xf32, #tpu.memory_space<vmem>>, %arg2: memref<32x16xf32, #tpu.memory_space<vmem>>, %arg3: memref<16x16xf32, #tpu.memory_space<vmem>>) attributes {dimension_semantics = [#tpu.dimension_semantics<parallel>], iteration_bounds = array<i64: 2>, scalar_prefetch = 0 : i64, scratch_operands = 0 : i64, tpu.core_type = #tpu.core_type<tc>, window_params = [{transform_indices = @transform_0, window_bounds = array<i64: 16, 32>}, {pipeline_mode = #tpu.pipeline_mode<synchronous>, transform_indices = @transform_1, window_bounds = array<i64: 32, 16>}, {transform_indices = @transform_2, window_bounds = array<i64: 16, 16>}]} {
    %c0 = arith.constant 0 : index
    %c0_0 = arith.constant 0 : index
    %0 = vector.load %arg1[%c0, %c0_0] : memref<16x32xf32, #tpu.memory_space<vmem>>, vector<16x32xf32>
    %c0_1 = arith.constant 0 : index
    %c0_2 = arith.constant 0 : index
    %1 = vector.load %arg2[%c0_1, %c0_2] : memref<32x16xf32, #tpu.memory_space<vmem>>, vector<32x16xf32>
    %cst = arith.constant dense<0.000000e+00> : vector<16x16xf32>
    %2 = tpu.matmul %0, %1, %cst {dimension_numbers = #tpu.dot_dimension_numbers<[1], [0], [0], [1], [0, 0, 1, 1], [], []>} : vector<16x32xf32>, vector<32x16xf32>, vector<16x16xf32> -> vector<16x16xf32>
    %c0_3 = arith.constant 0 : index
    %c0_4 = arith.constant 0 : index
    %3 = vector.load %arg3[%c0_3, %c0_4] : memref<16x16xf32, #tpu.memory_space<vmem>>, vector<16x16xf32>
    tpu.vector_store %arg3[%c0_3, %c0_4], %2 {strides = array<i32>} : memref<16x16xf32, #tpu.memory_space<vmem>>, vector<16x16xf32>,
    return
  }
  func.func @transform_0(%arg0: i32) -> (i32, i32) {
    %c0_i32 = arith.constant 0 : i32
    %c0_i32_0 = arith.constant 0 : i32
    return %arg0, %c0_i32 : i32, i32
  }
  func.func @transform_1(%arg0: i32) -> (i32, i32) {
    %c0_i32 = arith.constant 0 : i32
    %c0_i32_0 = arith.constant 0 : i32
    %c0_i32_1 = arith.constant 0 : i32
    return %c0_i32, %c0_i32_0 : i32, i32
  }
  func.func @transform_2(%arg0: i32) -> (i32, i32) {
    %c0_i32 = arith.constant 0 : i32
    %c0_i32_0 = arith.constant 0 : i32
    return %arg0, %c0_i32 : i32, i32
  }
}

module attributes {stable_mosaic.version = 11 : i64} {
  func.func @_gated_layer_kernel(%arg0: i32, %arg1: memref<16x32xf32, #tpu.memory_space<vmem>>, %arg2: memref<32x32xf32, #tpu.memory_space<vmem>>, %arg3: memref<32x16xf32, #tpu.memory_space<vmem>>, %arg4: memref<16x16xf32, #tpu.memory_space<vmem>>) attributes {dimension_semantics = [#tpu.dimension_semantics<parallel>], iteration_bounds = array<i64: 2>, scalar_prefetch = 0 : i64, scratch_operands = 0 : i64, tpu.core_type = #tpu.core_type<tc>, window_params = [{transform_indices = @transform_0, window_bounds = array<i64: 16, 32>}, {pipeline_mode = #tpu.pipeline_mode<synchronous>, transform_indices = @transform_1, window_bounds = array<i64: 32, 32>}, {pipeline_mode = #tpu.pipeline_mode<synchronous>, transform_indices = @transform_2, window_bounds = array<i64: 32, 16>}, {transform_indices = @transform_3, window_bounds = array<i64: 16, 16>}]} {
    %c0 = arith.constant 0 : index
    %c0_0 = arith.constant 0 : index
    %0 = vector.load %arg1[%c0, %c0_0] : memref<16x32xf32, #tpu.memory_space<vmem>>, vector<16x32xf32>
    %c0_1 = arith.constant 0 : index
    %c0_2 = arith.constant 0 : index
    %1 = vector.load %arg2[%c0_1, %c0_2] : memref<32x32xf32, #tpu.memory_space<vmem>>, vector<32x32xf32>
    %cst = arith.constant dense<0.000000e+00> : vector<16x32xf32>
    %2 = tpu.matmul %0, %1, %cst {dimension_numbers = #tpu.dot_dimension_numbers<[1], [0], [0], [1], [0, 0, 1, 1], [], []>} : vector<16x32xf32>, vector<32x32xf32>, vector<16x32xf32> -> vector<16x32xf32>
    %3 = vector.extract_strided_slice %2 {offsets = [0, 0], sizes = [16, 16], strides = [1, 1]} : vector<16x32xf32> to vector<16x16xf32>
    %4 = math.tanh %3 : vector<16x16xf32>
    %5 = vector.extract_strided_slice %2 {offsets = [0, 16], sizes = [16, 16], strides = [1, 1]} : vector<16x32xf32> to vector<16x16xf32>
    %6 = arith.negf %5 : vector<16x16xf32>
    %7 = math.exp %6 : vector<16x16xf32>
    %cst_3 = arith.constant 1.000000e+00 : f32
    %8 = vector.broadcast %cst_3 : f32 to vector<16x16xf32>
    %9 = arith.addf %8, %7 : vector<16x16xf32>
    %10 = arith.divf %8, %9 : vector<16x16xf32>
    %11 = arith.mulf %4, %10 : vector<16x16xf32>
    %12 = vector.extract_strided_slice %0 {offsets = [0, 16], sizes = [16, 16], strides = [1, 1]} : vector<16x32xf32> to vector<16x16xf32>
    %13 = tpu.concatenate %11, %12 in 1 : vector<16x16xf32>, vector<16x16xf32> -> vector<16x32xf32>
    %c0_4 = arith.constant 0 : index
    %c0_5 = arith.constant 0 : index
    %14 = vector.load %arg3[%c0_4, %c0_5] : memref<32x16xf32, #tpu.memory_space<vmem>>, vector<32x16xf32>
    %cst_6 = arith.constant dense<0.000000e+00> : vector<16x16xf32>
    %15 = tpu.matmul %13, %14, %cst_6 {dimension_numbers = #tpu.dot_dimension_numbers<[1], [0], [0], [1], [0, 0, 1, 1], [], []>} : vector<16x32xf32>, vector<32x16xf32>, vector<16x16xf32> -> vector<16x16xf32>
    %c0_7 = arith.constant 0 : index
    %c0_8 = arith.constant 0 : index
    %16 = vector.load %arg4[%c0_7, %c0_8] : memref<16x16xf32, #tpu.memory_space<vmem>>, vector<16x16xf32>
    tpu.vector_store %arg4[%c0_7, %c0_8], %15 {strides = array<i32>} : memref<16x16xf32, #tpu.memory_space<vmem>>, vector<16x16xf32>,
    return
  }
  func.func @transform_0(%arg0: i32) -> (i32, i32) {
    %c0_i32 = arith.constant 0 : i32
    %c0_i32_0 = arith.constant 0 : i32
    return %arg0, %c0_i32 : i32, i32
  }
  func.func @transform_1(%arg0: i32) -> (i32, i32) {
    %c0_i32 = arith.constant 0 : i32
    %c0_i32_0 = arith.constant 0 : i32
    %c0_i32_1 = arith.constant 0 : i32
    return %c0_i32, %c0_i32_0 : i32, i32
  }
  func.func @transform_2(%arg0: i32) -> (i32, i32) {
    %c0_i32 = arith.constant 0 : i32
    %c0_i32_0 = arith.constant 0 : i32
    %c0_i32_1 = arith.constant 0 : i32
    return %c0_i32, %c0_i32_0 : i32, i32
  }
  func.func @transform_3(%arg0: i32) -> (i32, i32) {
    %c0_i32 = arith.constant 0 : i32
    %c0_i32_0 = arith.constant 0 : i32
    return %arg0, %c0_i32 : i32, i32
  }
}

module attributes {stable_mosaic.version = 11 : i64} {
  func.func @_gated_layer_kernel(%arg0: i32, %arg1: memref<16x32xf32, #tpu.memory_space<vmem>>, %arg2: memref<32x32xf32, #tpu.memory_space<vmem>>, %arg3: memref<32x48xf32, #tpu.memory_space<vmem>>, %arg4: memref<16x48xf32, #tpu.memory_space<vmem>>) attributes {dimension_semantics = [#tpu.dimension_semantics<parallel>], iteration_bounds = array<i64: 2>, scalar_prefetch = 0 : i64, scratch_operands = 0 : i64, tpu.core_type = #tpu.core_type<tc>, window_params = [{transform_indices = @transform_0, window_bounds = array<i64: 16, 32>}, {pipeline_mode = #tpu.pipeline_mode<synchronous>, transform_indices = @transform_1, window_bounds = array<i64: 32, 32>}, {pipeline_mode = #tpu.pipeline_mode<synchronous>, transform_indices = @transform_2, window_bounds = array<i64: 32, 48>}, {transform_indices = @transform_3, window_bounds = array<i64: 16, 48>}]} {
    %c0 = arith.constant 0 : index
    %c0_0 = arith.constant 0 : index
    %0 = vector.load %arg1[%c0, %c0_0] : memref<16x32xf32, #tpu.memory_space<vmem>>, vector<16x32xf32>
    %c0_1 = arith.constant 0 : index
    %c0_2 = arith.constant 0 : index
    %1 = vector.load %arg2[%c0_1, %c0_2] : memref<32x32xf32, #tpu.memory_space<vmem>>, vector<32x32xf32>
    %cst = arith.constant dense<0.000000e+00> : vector<16x32xf32>
    %2 = tpu.matmul %0, %1, %cst {dimension_numbers = #tpu.dot_dimension_numbers<[1], [0], [0], [1], [0, 0, 1, 1], [], []>} : vector<16x32xf32>, vector<32x32xf32>, vector<16x32xf32> -> vector<16x32xf32>
    %3 = vector.extract_strided_slice %2 {offsets = [0, 0], sizes = [16, 16], strides = [1, 1]} : vector<16x32xf32> to vector<16x16xf32>
    %4 = math.tanh %3 : vector<16x16xf32>
    %5 = vector.extract_strided_slice %2 {offsets = [0, 16], sizes = [16, 16], strides = [1, 1]} : vector<16x32xf32> to vector<16x16xf32>
    %6 = arith.negf %5 : vector<16x16xf32>
    %7 = math.exp %6 : vector<16x16xf32>
    %cst_3 = arith.constant 1.000000e+00 : f32
    %8 = vector.broadcast %cst_3 : f32 to vector<16x16xf32>
    %9 = arith.addf %8, %7 : vector<16x16xf32>
    %10 = arith.divf %8, %9 : vector<16x16xf32>
    %11 = arith.mulf %4, %10 : vector<16x16xf32>
    %12 = vector.extract_strided_slice %0 {offsets = [0, 16], sizes = [16, 16], strides = [1, 1]} : vector<16x32xf32> to vector<16x16xf32>
    %13 = tpu.concatenate %11, %12 in 1 : vector<16x16xf32>, vector<16x16xf32> -> vector<16x32xf32>
    %c0_4 = arith.constant 0 : index
    %c0_5 = arith.constant 0 : index
    %14 = vector.load %arg3[%c0_4, %c0_5] : memref<32x48xf32, #tpu.memory_space<vmem>>, vector<32x48xf32>
    %cst_6 = arith.constant dense<0.000000e+00> : vector<16x48xf32>
    %15 = tpu.matmul %13, %14, %cst_6 {dimension_numbers = #tpu.dot_dimension_numbers<[1], [0], [0], [1], [0, 0, 1, 1], [], []>} : vector<16x32xf32>, vector<32x48xf32>, vector<16x48xf32> -> vector<16x48xf32>
    %c0_7 = arith.constant 0 : index
    %c0_8 = arith.constant 0 : index
    %16 = vector.load %arg4[%c0_7, %c0_8] : memref<16x48xf32, #tpu.memory_space<vmem>>, vector<16x48xf32>
    tpu.vector_store %arg4[%c0_7, %c0_8], %15 {strides = array<i32>} : memref<16x48xf32, #tpu.memory_space<vmem>>, vector<16x48xf32>,
    return
  }
  func.func @transform_0(%arg0: i32) -> (i32, i32) {
    %c0_i32 = arith.constant 0 : i32
    %c0_i32_0 = arith.constant 0 : i32
    return %arg0, %c0_i32 : i32, i32
  }
  func.func @transform_1(%arg0: i32) -> (i32, i32) {
    %c0_i32 = arith.constant 0 : i32
    %c0_i32_0 = arith.constant 0 : i32
    %c0_i32_1 = arith.constant 0 : i32
    return %c0_i32, %c0_i32_0 : i32, i32
  }
  func.func @transform_2(%arg0: i32) -> (i32, i32) {
    %c0_i32 = arith.constant 0 : i32
    %c0_i32_0 = arith.constant 0 : i32
    %c0_i32_1 = arith.constant 0 : i32
    return %c0_i32, %c0_i32_0 : i32, i32
  }
  func.func @transform_3(%arg0: i32) -> (i32, i32) {
    %c0_i32 = arith.constant 0 : i32
    %c0_i32_0 = arith.constant 0 : i32
    return %arg0, %c0_i32 : i32, i32
  }
}

module attributes {stable_mosaic.version = 11 : i64} {
  func.func @_head_kernel(%arg0: i32, %arg1: memref<8x32xf32, #tpu.memory_space<vmem>>, %arg2: memref<32x32xf32, #tpu.memory_space<vmem>>, %arg3: memref<1x32xf32, #tpu.memory_space<vmem>>, %arg4: memref<32x32xf32, #tpu.memory_space<vmem>>, %arg5: memref<1x32xf32, #tpu.memory_space<vmem>>, %arg6: memref<8x32xf32, #tpu.memory_space<vmem>>) attributes {dimension_semantics = [#tpu.dimension_semantics<parallel>], iteration_bounds = array<i64: 1>, scalar_prefetch = 0 : i64, scratch_operands = 0 : i64, tpu.core_type = #tpu.core_type<tc>, window_params = [{transform_indices = @transform_0, window_bounds = array<i64: 8, 32>}, {pipeline_mode = #tpu.pipeline_mode<synchronous>, transform_indices = @transform_1, window_bounds = array<i64: 32, 32>}, {pipeline_mode = #tpu.pipeline_mode<synchronous>, transform_indices = @transform_2, window_bounds = array<i64: 1, 32>}, {pipeline_mode = #tpu.pipeline_mode<synchronous>, transform_indices = @transform_3, window_bounds = array<i64: 32, 32>}, {pipeline_mode = #tpu.pipeline_mode<synchronous>, transform_indices = @transform_4, window_bounds = array<i64: 1, 32>}, {transform_indices = @transform_5, window_bounds = array<i64: 8, 32>}]} {
    %c0 = arith.constant 0 : index
    %c0_0 = arith.constant 0 : index
    %0 = vector.load %arg1[%c0, %c0_0] : memref<8x32xf32, #tpu.memory_space<vmem>>, vector<8x32xf32>
    %cst = arith.constant 0.000000e+00 : f32
    %1 = vector.broadcast %cst : f32 to vector<8x32xf32>
    %2 = arith.maximumf %0, %1 : vector<8x32xf32>
    %c0_1 = arith.constant 0 : index
    %c0_2 = arith.constant 0 : index
    %3 = vector.load %arg2[%c0_1, %c0_2] : memref<32x32xf32, #tpu.memory_space<vmem>>, vector<32x32xf32>
    %cst_3 = arith.constant dense<0.000000e+00> : vector<8x32xf32>
    %4 = tpu.matmul %2, %3, %cst_3 {dimension_numbers = #tpu.dot_dimension_numbers<[1], [0], [0], [1], [0, 0, 1, 1], [], []>} : vector<8x32xf32>, vector<32x32xf32>, vector<8x32xf32> -> vector<8x32xf32>
    %c0_4 = arith.constant 0 : index
    %c0_5 = arith.constant 0 : index
    %5 = vector.load %arg3[%c0_4, %c0_5] : memref<1x32xf32, #tpu.memory_space<vmem>>, vector<1x32xf32>
    %6 = vector.broadcast %5 : vector<1x32xf32> to vector<8x32xf32>
    %7 = arith.addf %4, %6 : vector<8x32xf32>
    %cst_6 = arith.constant 0.000000e+00 : f32
    %8 = vector.broadcast %cst_6 : f32 to vector<8x32xf32>
    %9 = arith.maximumf %7, %8 : vector<8x32xf32>
    %c0_7 = arith.constant 0 : index
    %c0_8 = arith.constant 0 : index
    %10 = vector.load %arg4[%c0_7, %c0_8] : memref<32x32xf32, #tpu.memory_space<vmem>>, vector<32x32xf32>
    %cst_9 = arith.constant dense<0.000000e+00> : vector<8x32xf32>
    %11 = tpu.matmul %9, %10, %cst_9 {dimension_numbers = #tpu.dot_dimension_numbers<[1], [0], [0], [1], [0, 0, 1, 1], [], []>} : vector<8x32xf32>, vector<32x32xf32>, vector<8x32xf32> -> vector<8x32xf32>
    %c0_10 = arith.constant 0 : index
    %c0_11 = arith.constant 0 : index
    %12 = vector.load %arg5[%c0_10, %c0_11] : memref<1x32xf32, #tpu.memory_space<vmem>>, vector<1x32xf32>
    %13 = vector.broadcast %12 : vector<1x32xf32> to vector<8x32xf32>
    %14 = arith.addf %11, %13 : vector<8x32xf32>
    %c0_12 = arith.constant 0 : index
    %c0_13 = arith.constant 0 : index
    %15 = vector.load %arg6[%c0_12, %c0_13] : memref<8x32xf32, #tpu.memory_space<vmem>>, vector<8x32xf32>
    tpu.vector_store %arg6[%c0_12, %c0_13], %14 {strides = array<i32>} : memref<8x32xf32, #tpu.memory_space<vmem>>, vector<8x32xf32>,
    return
  }
  func.func @transform_0(%arg0: i32) -> (i32, i32) {
    %c0_i32 = arith.constant 0 : i32
    %c0_i32_0 = arith.constant 0 : i32
    return %arg0, %c0_i32 : i32, i32
  }
  func.func @transform_1(%arg0: i32) -> (i32, i32) {
    %c0_i32 = arith.constant 0 : i32
    %c0_i32_0 = arith.constant 0 : i32
    %c0_i32_1 = arith.constant 0 : i32
    return %c0_i32, %c0_i32_0 : i32, i32
  }
  func.func @transform_2(%arg0: i32) -> (i32, i32) {
    %c0_i32 = arith.constant 0 : i32
    %c0_i32_0 = arith.constant 0 : i32
    %c0_i32_1 = arith.constant 0 : i32
    return %c0_i32, %c0_i32_0 : i32, i32
  }
  func.func @transform_3(%arg0: i32) -> (i32, i32) {
    %c0_i32 = arith.constant 0 : i32
    %c0_i32_0 = arith.constant 0 : i32
    %c0_i32_1 = arith.constant 0 : i32
    return %c0_i32, %c0_i32_0 : i32, i32
  }
  func.func @transform_4(%arg0: i32) -> (i32, i32) {
    %c0_i32 = arith.constant 0 : i32
    %c0_i32_0 = arith.constant 0 : i32
    %c0_i32_1 = arith.constant 0 : i32
    return %c0_i32, %c0_i32_0 : i32, i32
  }
  func.func @transform_5(%arg0: i32) -> (i32, i32) {
    %c0_i32 = arith.constant 0 : i32
    %c0_i32_0 = arith.constant 0 : i32
    return %arg0, %c0_i32 : i32, i32
  }
}

</mosaic_0001>

<llo_original>
// kernel: _lambda_.6
$region0: #{_lambda_.6}
  #allocation0 [shape = 'u32[]', space=smem, size = 0x4, offset = 0x4, fixed_abs, tag = 'smem constant byte address 0x4 - core index']
  #allocation1 [shape = 'u32[144,128]{1,0:T(1,128)}', space=vmem, size = 0x12000, scoped, tag = 'internal scratch']
  %s0 = inlined_call_operand.vmem [shape: f32[32,32], index: 0, kind: input, shape index: {}]
  %s1 = inlined_call_operand.vmem [shape: f32[32,16], index: 1, kind: input, shape index: {}]
  %s2 = inlined_call_operand.vmem [shape: f32[32,16], index: 2, kind: output, shape index: {}]
  %s3 = sld [smem:[#allocation0]]
  $region41: #{_lambda_.6} parent=0
    _
  %s5 = ssub.s32 1, %s3
  %s6 = scalar_select 0, %s5, %s3
  loop: start=0, step=1, limit=4
  $region2: #{_lambda_.6} parent=0 // loop_pre_header
    _
  $region3: #{_lambda_.6} parent=0 // loop_header
    %s8 = sphi 0, %s12
    %p9 = scmp.ge.s32.totalorder %s8, 4
    %s18 = sphi 0, %s20
    %s21 = sphi 0, %s18
    %s22 = sphi 0, %s21
    %s38 = sphi 0, %s22
    %s42 = sphi 0, %s42
    %s44 = sphi 0, %s42
    %s45 = sphi 0, %s44
    %s59 = sphi 0, %s45
    %s65 = sphi 0, %s67
    %s68 = sphi 0, %s65
    %s69 = sphi 0, %s68
    %s85 = sphi 0, %s69
  $region4: #{_lambda_.6} parent=0 // loop_header_branch
    %11 = sbr.rel (%p9) target = $region8
  $region5: #{_lambda_.6} parent=0 // loop_body
    %s13 = ssub.s32 %s8, 1
    %s14 = ssub.s32 %s8, 2
    %s15 = sadd.s32 %s8, 1
    %s16 = ssub.s32 %s8, %s15
    %p17 = scmp.eq.s32.totalorder %s16, 0
    %s19 = sadd.s32 %s18, 1
    %s20 = scalar_select %p17, %s18, %s19
    %p23 = pneg %p17
    %p24 = scmp.eq.s32.totalorder %s8, 1
    %p25 = por %p23, %p24
    %p26 = scmp.ne.s32.totalorder %s18, %s21
    %p27 = scmp.eq.s32.totalorder %s8, 0
    %p28 = por %p26, %p27
    %p29 = scmp.ne.s32.totalorder %s18, %s21
    %p30 = scmp.eq.s32.totalorder %s13, 1
    %p31 = por %p29, %p30
    %p32 = scmp.ne.s32.totalorder %s21, %s22
    %p33 = scmp.eq.s32.totalorder %s13, 0
    %p34 = por %p32, %p33
    %p35 = scmp.ne.s32.totalorder %s21, %s22
    %p36 = scmp.eq.s32.totalorder %s14, 1
    %p37 = por %p35, %p36
    %p39 = scmp.ne.s32.totalorder %s22, %s38
    %p40 = scmp.eq.s32.totalorder %s14, 0
    %p41 = por %p39, %p40
    %s43 = sadd.s32 %s42, 1
    %p46 = scmp.eq.s32.totalorder %s8, 1
    %p47 = scmp.ne.s32.totalorder %s42, %s44
    %p48 = scmp.eq.s32.totalorder %s8, 0
    %p49 = por %p47, %p48
    %p50 = scmp.ne.s32.totalorder %s42, %s44
    %p51 = scmp.eq.s32.totalorder %s13, 1
    %p52 = por %p50, %p51
    %p53 = scmp.ne.s32.totalorder %s44, %s45
    %p54 = scmp.eq.s32.totalorder %s13, 0
    %p55 = por %p53, %p54
    %p56 = scmp.ne.s32.totalorder %s44, %s45
    %p57 = scmp.eq.s32.totalorder %s14, 1
    %p58 = por %p56, %p57
    %p60 = scmp.ne.s32.totalorder %s45, %s59
    %p61 = scmp.eq.s32.totalorder %s14, 0
    %p62 = por %p60, %p61
    %s63 = ssub.s32 %s8, %s15
    %p64 = scmp.eq.s32.totalorder %s63, 0
    %s66 = sadd.s32 %s65, 1
    %s67 = scalar_select %p64, %s65, %s66
    %p70 = pneg %p64
    %p71 = scmp.eq.s32.totalorder %s8, 1
    %p72 = por %p70, %p71
    %p73 = scmp.ne.s32.totalorder %s65, %s68
    %p74 = scmp.eq.s32.totalorder %s8, 0
    %p75 = por %p73, %p74
    %p76 = scmp.ne.s32.totalorder %s65, %s68
    %p77 = scmp.eq.s32.totalorder %s13, 1
    %p78 = por %p76, %p77
    %p79 = scmp.ne.s32.totalorder %s68, %s69
    %p80 = scmp.eq.s32.totalorder %s13, 0
    %p81 = por %p79, %p80
    %p82 = scmp.ne.s32.totalorder %s68, %s69
    %p83 = scmp.eq.s32.totalorder %s14, 1
    %p84 = por %p82, %p83
    %p86 = scmp.ne.s32.totalorder %s69, %s85
    %p87 = scmp.eq.s32.totalorder %s14, 0
    %p88 = por %p86, %p87
    %p89 = scmp.le.s32.totalorder 1, %s8
    %p90 = scmp.lt.s32.totalorder %s8, 3
    %p91 = pnand %p89, %p90
    %p92 = pneg %p91
    // Predicated region
    $region9: #{_lambda_.6} parent=5 // pred_check
      _
    $region10: #{_lambda_.6} parent=5 // pred_check_branch
      %94 = sbr.rel (%p91) target = $region12
    $region11: #{_lambda_.6} parent=5 // pred_region
      %s95 = ssub.s32 %s8, 1
      // Predicated region
      $region13: #{_lambda_.6} parent=11 // pred_check
        %p96 = pneg %p55
      $region14: #{_lambda_.6} parent=11 // pred_check_branch
        %98 = sbr.rel (%p96) target = $region16
      $region15: #{_lambda_.6} parent=11 // pred_region
        _
      $region16: #{_lambda_.6} parent=11 // pred_fallthru
        _
    $region12: #{_lambda_.6} parent=5 // pred_fallthru
      _
    %p99 = scmp.lt.s32.totalorder %s8, 2
    // Predicated region
    $region17: #{_lambda_.6} parent=5 // pred_check
      %p100 = pneg %p99
    $region18: #{_lambda_.6} parent=5 // pred_check_branch
      %102 = sbr.rel (%p100) target = $region20
    $region19: #{_lambda_.6} parent=5 // pred_region
      // Predicated region
      $region21: #{_lambda_.6} parent=19 // pred_check
        %p103 = pneg %p28
      $region22: #{_lambda_.6} parent=19 // pred_check_branch
        %105 = sbr.rel (%p103) target = $region24
      $region23: #{_lambda_.6} parent=19 // pred_region
        %s106 = smul.u32 2, %s8
        %p107 = scmp.lt.s32.totalorder %s106, 3
        %s108 = scalar_select %p107, %s106, 3
        %s109 = smul.addr %s108, 8
        %s110 = scalar_lea.vmem %s0, %s109
        %s111 = smul.u32 2, %s8
      $region24: #{_lambda_.6} parent=19 // pred_fallthru
        _
    $region20: #{_lambda_.6} parent=5 // pred_fallthru
      _
    %p112 = scmp.le.s32.totalorder 1, %s8
    %p113 = scmp.lt.s32.totalorder %s8, 3
    %p114 = pnand %p112, %p113
    %p115 = pneg %p114
    // Predicated region
    $region25: #{_lambda_.6} parent=5 // pred_check
      _
    $region26: #{_lambda_.6} parent=5 // pred_check_branch
      %117 = sbr.rel (%p114) target = $region28
    $region27: #{_lambda_.6} parent=5 // pred_region
      %s118 = ssub.s32 %s8, 1
      %s119 = smul.u32 2, %s13
      %p120 = scmp.lt.s32.totalorder %s119, 3
      %s121 = scalar_select %p120, %s119, 3
      %s122 = smul.addr %s121, 8
      %s123 = scalar_lea.vmem %s0, %s122
      %p124 = pneg %p34
      %p125 = pneg %p31
      %p126 = pneg %p55
      %p127 = pneg %p52
      %p128 = pneg %p81
      %p129 = pneg %p78
      %s130 = smul.u32 2, %s13
      %p131 = scmp.lt.s32.totalorder %s130, 3
      %s132 = scalar_select %p131, %s130, 3
      %s133 = smul.addr %s132, 8
      %s134 = scalar_lea.vmem %s2, %s133
      %s135 = smul.u32 2, %s13
      %p136 = scmp.lt.s32.totalorder %s135, 3
      %s137 = scalar_select %p136, %s135, 3
      %s138 = smul.addr %s137, 8
      %s139 = scalar_lea.vmem %s0, %s138
      %s140 = smul.u32 2, %s13
      %s141 = smul.u32 2, %s13
      %p142 = scmp.lt.s32.totalorder %s141, 3
      %s143 = scalar_select %p142, %s141, 3
      %s144 = smul.addr %s143, 8
      %s145 = scalar_lea.vmem %s2, %s144
      %s146 = smul.u32 2, %s13
      %v147 = vld [vmem:[%s139] sm:$0xff]
      %v148 = vld [vmem:[%s139 + $0x8] sm:$0xff]
      %v149 = vld [vmem:[%s1] sm:$0xff]
      %v150 = vld [vmem:[%s1 + $0x8] sm:$0xff]
      %v151 = vld [vmem:[%s1 + $0x10] sm:$0xff]
      %v152 = vld [vmem:[%s1 + $0x18] sm:$0xff]
      %vm153 = vcmask 261120
      %v155 = vsel %vm153, %v147, 0
      %v158 = vsel %vm153, %v148, 0
      %160 = vmatprep.subr.mxu0 0.0
      %161 = vmatpush1.msra.mxu0 0.0
      %162 = vmatprep.subr.mxu0 0.0
      %163 = vmatpush1.msra.mxu0 0.0
      %164 = vmatprep.subr.mxu0 0.0
      %165 = vmatpush1.msra.mxu0 0.0
      %166 = vmatprep.subr.mxu0 0.0
      %167 = vmatpush1.msra.mxu0 0.0
      %168 = vmatprep.subr.mxu0 0.0
      %169 = vmatpush1.msra.mxu0 0.0
      %170 = vmatprep.subr.mxu0 0.0
      %171 = vmatpush1.msra.mxu0 0.0
      %172 = vmatprep.subr.mxu0 0.0
      %173 = vmatpush1.msra.mxu0 0.0
      %174 = vmatprep.subr.mxu0 0.0
      %175 = vmatpush1.msra.mxu0 0.0
      %176 = vmatprep.subr.mxu0 0.0
      %177 = vmatpush1.msra.mxu0 0.0
      %178 = vmatprep.subr.mxu0 0.0
      %179 = vmatpush1.msra.mxu0 0.0
      %180 = vmatprep.subr.mxu0 0.0
      %181 = vmatpush1.msra.mxu0 0.0
      %182 = vmatprep.subr.mxu0 0.0
      %183 = vmatpush1.msra.mxu0 0.0
      %184 = vmatprep.subr.mxu0 0.0
      %185 = vmatpush1.msra.mxu0 %v152
      %186 = vmatprep.subr.mxu0 0.0
      %187 = vmatpush1.msra.mxu0 %v151
      %188 = vmatprep.subr.mxu0 0.0
      %189 = vmatpush1.msra.mxu0 %v150
      %190 = vmatprep.subr.mxu0 0.0
      %191 = vmatpush1.msra.mxu0 %v149
      %192 = vmatprep.subr.mxu0 0.0
      %193 = vmatpush2.msra.mxu0 0.0
      %194 = vmatprep.subr.mxu0 0.0
      %195 = vmatpush2.msra.mxu0 0.0
      %196 = vmatprep.subr.mxu0 0.0
      %197 = vmatpush2.msra.mxu0 0.0
      %198 = vmatprep.subr.mxu0 0.0
      %199 = vmatpush2.msra.mxu0 0.0
      %200 = vmatprep.subr.mxu0 0.0
      %201 = vmatpush2.msra.mxu0 0.0
      %202 = vmatprep.subr.mxu0 0.0
      %203 = vmatpush2.msra.mxu0 0.0
      %204 = vmatprep.subr.mxu0 0.0
      %205 = vmatpush2.msra.mxu0 0.0
      %206 = vmatprep.subr.mxu0 0.0
      %207 = vmatpush2.msra.mxu0 0.0
      %208 = vmatprep.subr.mxu0 0.0
      %209 = vmatpush2.msra.mxu0 0.0
      %210 = vmatprep.subr.mxu0 0.0
      %211 = vmatpush2.msra.mxu0 0.0
      %212 = vmatprep.subr.mxu0 0.0
      %213 = vmatpush2.msra.mxu0 0.0
      %214 = vmatprep.subr.mxu0 0.0
      %215 = vmatpush2.msra.mxu0 0.0
      %216 = vmatprep.subr.mxu0 0.0
      %217 = vmatpush2.msra.mxu0 0.0
      %218 = vmatprep.subr.mxu0 0.0
      %219 = vmatpush2.msra.mxu0 0.0
      %220 = vmatprep.subr.mxu0 0.0
      %221 = vmatpush2.msra.mxu0 0.0
      %222 = vmatprep.subr.mxu0 0.0
      %223 = vmatpush2.msra.mxu0 0.0
      %224 = vmatprep.mubr.f32.mxu0 0.0
      %225 = vmatmul.mubr.f32.gmra.mxu0 %v155
      %v226 = vpop.f32.mrf.mxu0
      %v227 = vadd.f32 0.0, %v226
      %v228 = vpop.f32.mrf.mxu0
      %229 = vmatprep.mubr.f32.mxu0 0.0
      %230 = vmatmul.mubr.f32.gmra.mxu0 %v158
      %v231 = vpop.f32.mrf.mxu0
      %v232 = vadd.f32 0.0, %v231
      %v233 = vpop.f32.mrf.mxu0
      %234 = vdwg.mxu0
      %vm235 = vcmask 130048
      %236 = vst.msk [vmem:[%s145] sm:$0xff] %vm235, %v227
      %237 = vst.msk [vmem:[%s145 + $0x8] sm:$0xff] %vm235, %v232
      %s238 = smul.u32 2, %s13
      %p239 = scmp.lt.s32.totalorder %s238, 3
      %s240 = scalar_select %p239, %s238, 3
      %s241 = smul.addr %s240, 8
      %s242 = scalar_lea.vmem %s2, %s241
      // Predicated region
      $region29: #{_lambda_.6} parent=27 // pred_check
        %p243 = pneg %p78
      $region30: #{_lambda_.6} parent=27 // pred_check_branch
        %245 = sbr.rel (%p243) target = $region32
      $region31: #{_lambda_.6} parent=27 // pred_region
        %s246 = smul.u32 2, %s13
      $region32: #{_lambda_.6} parent=27 // pred_fallthru
        _
    $region28: #{_lambda_.6} parent=5 // pred_fallthru
      _
    %p247 = scmp.le.s32.totalorder 2, %s8
    // Predicated region
    $region33: #{_lambda_.6} parent=5 // pred_check
      %p248 = pneg %p247
    $region34: #{_lambda_.6} parent=5 // pred_check_branch
      %250 = sbr.rel (%p248) target = $region36
    $region35: #{_lambda_.6} parent=5 // pred_region
      %s251 = ssub.s32 %s8, 2
      // Predicated region
      $region37: #{_lambda_.6} parent=35 // pred_check
        %p252 = pneg %p84
      $region38: #{_lambda_.6} parent=35 // pred_check_branch
        %254 = sbr.rel (%p252) target = $region40
      $region39: #{_lambda_.6} parent=35 // pred_region
        %s255 = smul.u32 2, %s14
        %p256 = scmp.lt.s32.totalorder %s255, 3
        %s257 = scalar_select %p256, %s255, 3
        %s258 = smul.addr %s257, 8
        %s259 = scalar_lea.vmem %s2, %s258
      $region40: #{_lambda_.6} parent=35 // pred_fallthru
        _
    $region36: #{_lambda_.6} parent=5 // pred_fallthru
      _
  $region6: #{_lambda_.6} parent=0 // loop_footer
    %s12 = sadd.s32 1, %s8
  $region7: #{_lambda_.6} parent=0 // loop_footer_branch
    %7 = sbr.rel target = $region3
  $region8: #{_lambda_.6} parent=0 // loop_exit
    _

// kernel: _lambda_.7
$region0: #{_lambda_.7}
  #allocation0 [shape = 'u32[]', space=smem, size = 0x4, offset = 0x4, fixed_abs, tag = 'smem constant byte address 0x4 - core index']
  #allocation1 [shape = 'u32[144,128]{1,0:T(1,128)}', space=vmem, size = 0x12000, scoped, tag = 'internal scratch']
  %s0 = inlined_call_operand.vmem [shape: f32[32,32], index: 0, kind: input, shape index: {}]
  %s1 = inlined_call_operand.vmem [shape: f32[32,32], index: 1, kind: input, shape index: {}]
  %s2 = inlined_call_operand.vmem [shape: f32[32,16], index: 2, kind: input, shape index: {}]
  %s3 = inlined_call_operand.vmem [shape: f32[32,16], index: 3, kind: output, shape index: {}]
  %s4 = sld [smem:[#allocation0]]
  $region45: #{_lambda_.7} parent=0
    _
  %s6 = ssub.s32 1, %s4
  %s7 = scalar_select 0, %s6, %s4
  loop: start=0, step=1, limit=4
  $region2: #{_lambda_.7} parent=0 // loop_pre_header
    _
  $region3: #{_lambda_.7} parent=0 // loop_header
    %s9 = sphi 0, %s13
    %p10 = scmp.ge.s32.totalorder %s9, 4
    %s19 = sphi 0, %s21
    %s22 = sphi 0, %s19
    %s23 = sphi 0, %s22
    %s39 = sphi 0, %s23
    %s43 = sphi 0, %s43
    %s45 = sphi 0, %s43
    %s46 = sphi 0, %s45
    %s60 = sphi 0, %s46
    %s64 = sphi 0, %s64
    %s66 = sphi 0, %s64
    %s67 = sphi 0, %s66
    %s81 = sphi 0, %s67
    %s87 = sphi 0, %s89
    %s90 = sphi 0, %s87
    %s91 = sphi 0, %s90
    %s107 = sphi 0, %s91
  $region4: #{_lambda_.7} parent=0 // loop_header_branch
    %12 = sbr.rel (%p10) target = $region8
  $region5: #{_lambda_.7} parent=0 // loop_body
    %s14 = ssub.s32 %s9, 1
    %s15 = ssub.s32 %s9, 2
    %s16 = sadd.s32 %s9, 1
    %s17 = ssub.s32 %s9, %s16
    %p18 = scmp.eq.s32.totalorder %s17, 0
    %s20 = sadd.s32 %s19, 1
    %s21 = scalar_select %p18, %s19, %s20
    %p24 = pneg %p18
    %p25 = scmp.eq.s32.totalorder %s9, 1
    %p26 = por %p24, %p25
    %p27 = scmp.ne.s32.totalorder %s19, %s22
    %p28 = scmp.eq.s32.totalorder %s9, 0
    %p29 = por %p27, %p28
    %p30 = scmp.ne.s32.totalorder %s19, %s22
    %p31 = scmp.eq.s32.totalorder %s14, 1
    %p32 = por %p30, %p31
    %p33 = scmp.ne.s32.totalorder %s22, %s23
    %p34 = scmp.eq.s32.totalorder %s14, 0
    %p35 = por %p33, %p34
    %p36 = scmp.ne.s32.totalorder %s22, %s23
    %p37 = scmp.eq.s32.totalorder %s15, 1
    %p38 = por %p36, %p37
    %p40 = scmp.ne.s32.totalorder %s23, %s39
    %p41 = scmp.eq.s32.totalorder %s15, 0
    %p42 = por %p40, %p41
    %s44 = sadd.s32 %s43, 1
    %p47 = scmp.eq.s32.totalorder %s9, 1
    %p48 = scmp.ne.s32.totalorder %s43, %s45
    %p49 = scmp.eq.s32.totalorder %s9, 0
    %p50 = por %p48, %p49
    %p51 = scmp.ne.s32.totalorder %s43, %s45
    %p52 = scmp.eq.s32.totalorder %s14, 1
    %p53 = por %p51, %p52
    %p54 = scmp.ne.s32.totalorder %s45, %s46
    %p55 = scmp.eq.s32.totalorder %s14, 0
    %p56 = por %p54, %p55
    %p57 = scmp.ne.s32.totalorder %s45, %s46
    %p58 = scmp.eq.s32.totalorder %s15, 1
    %p59 = por %p57, %p58
    %p61 = scmp.ne.s32.totalorder %s46, %s60
    %p62 = scmp.eq.s32.totalorder %s15, 0
    %p63 = por %p61, %p62
    %s65 = sadd.s32 %s64, 1
    %p68 = scmp.eq.s32.totalorder %s9, 1
    %p69 = scmp.ne.s32.totalorder %s64, %s66
    %p70 = scmp.eq.s32.totalorder %s9, 0
    %p71 = por %p69, %p70
    %p72 = scmp.ne.s32.totalorder %s64, %s66
    %p73 = scmp.eq.s32.totalorder %s14, 1
    %p74 = por %p72, %p73
    %p75 = scmp.ne.s32.totalorder %s66, %s67
    %p76 = scmp.eq.s32.totalorder %s14, 0
    %p77 = por %p75, %p76
    %p78 = scmp.ne.s32.totalorder %s66, %s67
    %p79 = scmp.eq.s32.totalorder %s15, 1
    %p80 = por %p78, %p79
    %p82 = scmp.ne.s32.totalorder %s67, %s81
    %p83 = scmp.eq.s32.totalorder %s15, 0
    %p84 = por %p82, %p83
    %s85 = ssub.s32 %s9, %s16
    %p86 = scmp.eq.s32.totalorder %s85, 0
    %s88 = sadd.s32 %s87, 1
    %s89 = scalar_select %p86, %s87, %s88
    %p92 = pneg %p86
    %p93 = scmp.eq.s32.totalorder %s9, 1
    %p94 = por %p92, %p93
    %p95 = scmp.ne.s32.totalorder %s87, %s90
    %p96 = scmp.eq.s32.totalorder %s9, 0
    %p97 = por %p95, %p96
    %p98 = scmp.ne.s32.totalorder %s87, %s90
    %p99 = scmp.eq.s32.totalorder %s14, 1
    %p100 = por %p98, %p99
    %p101 = scmp.ne.s32.totalorder %s90, %s91
    %p102 = scmp.eq.s32.totalorder %s14, 0
    %p103 = por %p101, %p102
    %p104 = scmp.ne.s32.totalorder %s90, %s91
    %p105 = scmp.eq.s32.totalorder %s15, 1
    %p106 = por %p104, %p105
    %p108 = scmp.ne.s32.totalorder %s91, %s107
    %p109 = scmp.eq.s32.totalorder %s15, 0
    %p110 = por %p108, %p109
    %p111 = scmp.le.s32.totalorder 1, %s9
    %p112 = scmp.lt.s32.totalorder %s9, 3
    %p113 = pnand %p111, %p112
    %p114 = pneg %p113
    // Predicated region
    $region9: #{_lambda_.7} parent=5 // pred_check
      _
    $region10: #{_lambda_.7} parent=5 // pred_check_branch
      %116 = sbr.rel (%p113) target = $region12
    $region11: #{_lambda_.7} parent=5 // pred_region
      %s117 = ssub.s32 %s9, 1
      // Predicated region
      $region13: #{_lambda_.7} parent=11 // pred_check
        %p118 = pneg %p56
      $region14: #{_lambda_.7} parent=11 // pred_check_branch
        %120 = sbr.rel (%p118) target = $region16
      $region15: #{_lambda_.7} parent=11 // pred_region
        _
      $region16: #{_lambda_.7} parent=11 // pred_fallthru
        _
      // Predicated region
      $region17: #{_lambda_.7} parent=11 // pred_check
        %p121 = pneg %p77
      $region18: #{_lambda_.7} parent=11 // pred_check_branch
        %123 = sbr.rel (%p121) target = $region20
      $region19: #{_lambda_.7} parent=11 // pred_region
        _
      $region20: #{_lambda_.7} parent=11 // pred_fallthru
        _
    $region12: #{_lambda_.7} parent=5 // pred_fallthru
      _
    %p124 = scmp.lt.s32.totalorder %s9, 2
    // Predicated region
    $region21: #{_lambda_.7} parent=5 // pred_check
      %p125 = pneg %p124
    $region22: #{_lambda_.7} parent=5 // pred_check_branch
      %127 = sbr.rel (%p125) target = $region24
    $region23: #{_lambda_.7} parent=5 // pred_region
      // Predicated region
      $region25: #{_lambda_.7} parent=23 // pred_check
        %p128 = pneg %p29
      $region26: #{_lambda_.7} parent=23 // pred_check_branch
        %130 = sbr.rel (%p128) target = $region28
      $region27: #{_lambda_.7} parent=23 // pred_region
        %s131 = smul.u32 2, %s9
        %p132 = scmp.lt.s32.totalorder %s131, 3
        %s133 = scalar_select %p132, %s131, 3
        %s134 = smul.addr %s133, 8
        %s135 = scalar_lea.vmem %s0, %s134
        %s136 = smul.u32 2, %s9
      $region28: #{_lambda_.7} parent=23 // pred_fallthru
        _
    $region24: #{_lambda_.7} parent=5 // pred_fallthru
      _
    %p137 = scmp.le.s32.totalorder 1, %s9
    %p138 = scmp.lt.s32.totalorder %s9, 3
    %p139 = pnand %p137, %p138
    %p140 = pneg %p139
    // Predicated region
    $region29: #{_lambda_.7} parent=5 // pred_check
      _
    $region30: #{_lambda_.7} parent=5 // pred_check_branch
      %142 = sbr.rel (%p139) target = $region32
    $region31: #{_lambda_.7} parent=5 // pred_region
      %s143 = ssub.s32 %s9, 1
      %s144 = smul.u32 2, %s14
      %p145 = scmp.lt.s32.totalorder %s144, 3
      %s146 = scalar_select %p145, %s144, 3
      %s147 = smul.addr %s146, 8
      %s148 = scalar_lea.vmem %s0, %s147
      %p149 = pneg %p35
      %p150 = pneg %p32
      %p151 = pneg %p56
      %p152 = pneg %p53
      %p153 = pneg %p77
      %p154 = pneg %p74
      %p155 = pneg %p103
      %p156 = pneg %p100
      %s157 = smul.u32 2, %s14
      %p158 = scmp.lt.s32.totalorder %s157, 3
      %s159 = scalar_select %p158, %s157, 3
      %s160 = smul.addr %s159, 8
      %s161 = scalar_lea.vmem %s3, %s160
      %s162 = smul.u32 2, %s14
      %p163 = scmp.lt.s32.totalorder %s162, 3
      %s164 = scalar_select %p163, %s162, 3
      %s165 = smul.addr %s164, 8
      %s166 = scalar_lea.vmem %s0, %s165
      %s167 = smul.u32 2, %s14
      %s168 = smul.u32 2, %s14
      %p169 = scmp.lt.s32.totalorder %s168, 3
      %s170 = scalar_select %p169, %s168, 3
      %s171 = smul.addr %s170, 8
      %s172 = scalar_lea.vmem %s3, %s171
      %s173 = smul.u32 2, %s14
      %v174 = vld [vmem:[%s166] sm:$0xff]
      %v175 = vld [vmem:[%s166 + $0x8] sm:$0xff]
      %v176 = vld [vmem:[%s1] sm:$0xff]
      %v177 = vld [vmem:[%s1 + $0x8] sm:$0xff]
      %v178 = vld [vmem:[%s1 + $0x10] sm:$0xff]
      %v179 = vld [vmem:[%s1 + $0x18] sm:$0xff]
      %vm180 = vcmask 261120
      %v182 = vsel %vm180, %v174, 0
      %v185 = vsel %vm180, %v175, 0
      %187 = vmatprep.subr.mxu0 0.0
      %188 = vmatpush1.msra.mxu0 0.0
      %189 = vmatprep.subr.mxu0 0.0
      %190 = vmatpush1.msra.mxu0 0.0
      %191 = vmatprep.subr.mxu0 0.0
      %192 = vmatpush1.msra.mxu0 0.0
      %193 = vmatprep.subr.mxu0 0.0
      %194 = vmatpush1.msra.mxu0 0.0
      %195 = vmatprep.subr.mxu0 0.0
      %196 = vmatpush1.msra.mxu0 0.0
      %197 = vmatprep.subr.mxu0 0.0
      %198 = vmatpush1.msra.mxu0 0.0
      %199 = vmatprep.subr.mxu0 0.0
      %200 = vmatpush1.msra.mxu0 0.0
      %201 = vmatprep.subr.mxu0 0.0
      %202 = vmatpush1.msra.mxu0 0.0
      %203 = vmatprep.subr.mxu0 0.0
      %204 = vmatpush1.msra.mxu0 0.0
      %205 = vmatprep.subr.mxu0 0.0
      %206 = vmatpush1.msra.mxu0 0.0
      %207 = vmatprep.subr.mxu0 0.0
      %208 = vmatpush1.msra.mxu0 0.0
      %209 = vmatprep.subr.mxu0 0.0
      %210 = vmatpush1.msra.mxu0 0.0
      %211 = vmatprep.subr.mxu0 0.0
      %212 = vmatpush1.msra.mxu0 %v179
      %213 = vmatprep.subr.mxu0 0.0
      %214 = vmatpush1.msra.mxu0 %v178
      %215 = vmatprep.subr.mxu0 0.0
      %216 = vmatpush1.msra.mxu0 %v177
      %217 = vmatprep.subr.mxu0 0.0
      %218 = vmatpush1.msra.mxu0 %v176
      %219 = vmatprep.subr.mxu0 0.0
      %220 = vmatpush2.msra.mxu0 0.0
      %221 = vmatprep.subr.mxu0 0.0
      %222 = vmatpush2.msra.mxu0 0.0
      %223 = vmatprep.subr.mxu0 0.0
      %224 = vmatpush2.msra.mxu0 0.0
      %225 = vmatprep.subr.mxu0 0.0
      %226 = vmatpush2.msra.mxu0 0.0
      %227 = vmatprep.subr.mxu0 0.0
      %228 = vmatpush2.msra.mxu0 0.0
      %229 = vmatprep.subr.mxu0 0.0
      %230 = vmatpush2.msra.mxu0 0.0
      %231 = vmatprep.subr.mxu0 0.0
      %232 = vmatpush2.msra.mxu0 0.0
      %233 = vmatprep.subr.mxu0 0.0
      %234 = vmatpush2.msra.mxu0 0.0
      %235 = vmatprep.subr.mxu0 0.0
      %236 = vmatpush2.msra.mxu0 0.0
      %237 = vmatprep.subr.mxu0 0.0
      %238 = vmatpush2.msra.mxu0 0.0
      %239 = vmatprep.subr.mxu0 0.0
      %240 = vmatpush2.msra.mxu0 0.0
      %241 = vmatprep.subr.mxu0 0.0
      %242 = vmatpush2.msra.mxu0 0.0
      %243 = vmatprep.subr.mxu0 0.0
      %244 = vmatpush2.msra.mxu0 0.0
      %245 = vmatprep.subr.mxu0 0.0
      %246 = vmatpush2.msra.mxu0 0.0
      %247 = vmatprep.subr.mxu0 0.0
      %248 = vmatpush2.msra.mxu0 0.0
      %249 = vmatprep.subr.mxu0 0.0
      %250 = vmatpush2.msra.mxu0 0.0
      %251 = vmatprep.mubr.f32.mxu0 0.0
      %252 = vmatmul.mubr.f32.gmra.mxu0 %v182
      %v253 = vpop.f32.mrf.mxu0
      %v254 = vadd.f32 0.0, %v253
      %v255 = vpop.f32.mrf.mxu0
      %256 = vmatprep.mubr.f32.mxu0 0.0
      %257 = vmatmul.mubr.f32.gmra.mxu0 %v185
      %v258 = vpop.f32.mrf.mxu0
      %v259 = vadd.f32 0.0, %v258
      %v260 = vpop.f32.mrf.mxu0
      %261 = vdwg.mxu0
      %v262 = vtanh.pop %v254
      %v263 = vtanh.pop %v259
      %v264 = vxor.u32 %v254, 2147483648
      %v265 = vxor.u32 %v259, 2147483648
      %v266 = vmul.f32 %v264, 1.442695
      %v267 = vpow.pop %v266
      %v268 = vmul.f32 %v265, 1.442695
      %v269 = vpow.pop %v268
      %v270 = vadd.f32 %v267, 1.0
      %v271 = vadd.f32 %v269, 1.0
      %v272 = vrcp.pop %v270
      %v273 = vmul.f32 1.0, %v272
      %v274 = vrcp.pop %v271
      %v275 = vmul.f32 1.0, %v274
      %278 = vrot.lane.b32.xlu0 %v273, 112
      %v279 = vpop.permute.xlu0 %278
      %280 = vrot.lane.b32.xlu0 %v275, 112
      %v281 = vpop.permute.xlu0 %280
      %v284 = vmul.f32 %v262, %v279
      %v285 = vmul.f32 %v263, %v281
      %vm286 = vcmask 130048
      %v287 = vsel %vm286, %v284, %v174
      %v288 = vsel %vm286, %v285, %v175
      %v289 = vld [vmem:[%s2] sm:$0xff]
      %v290 = vld [vmem:[%s2 + $0x8] sm:$0xff]
      %v291 = vld [vmem:[%s2 + $0x10] sm:$0xff]
      %v292 = vld [vmem:[%s2 + $0x18] sm:$0xff]
      %v294 = vsel %vm180, %v287, 0
      %v297 = vsel %vm180, %v288, 0
      %299 = vmatprep.subr.mxu0 0.0
      %300 = vmatpush1.msra.mxu0 0.0
      %301 = vmatprep.subr.mxu0 0.0
      %302 = vmatpush1.msra.mxu0 0.0
      %303 = vmatprep.subr.mxu0 0.0
      %304 = vmatpush1.msra.mxu0 0.0
      %305 = vmatprep.subr.mxu0 0.0
      %306 = vmatpush1.msra.mxu0 0.0
      %307 = vmatprep.subr.mxu0 0.0
      %308 = vmatpush1.msra.mxu0 0.0
      %309 = vmatprep.subr.mxu0 0.0
      %310 = vmatpush1.msra.mxu0 0.0
      %311 = vmatprep.subr.mxu0 0.0
      %312 = vmatpush1.msra.mxu0 0.0
      %313 = vmatprep.subr.mxu0 0.0
      %314 = vmatpush1.msra.mxu0 0.0
      %315 = vmatprep.subr.mxu0 0.0
      %316 = vmatpush1.msra.mxu0 0.0
      %317 = vmatprep.subr.mxu0 0.0
      %318 = vmatpush1.msra.mxu0 0.0
      %319 = vmatprep.subr.mxu0 0.0
      %320 = vmatpush1.msra.mxu0 0.0
      %321 = vmatprep.subr.mxu0 0.0
      %322 = vmatpush1.msra.mxu0 0.0
      %323 = vmatprep.subr.mxu0 0.0
      %324 = vmatpush1.msra.mxu0 %v292
      %325 = vmatprep.subr.mxu0 0.0
      %326 = vmatpush1.msra.mxu0 %v291
      %327 = vmatprep.subr.mxu0 0.0
      %328 = vmatpush1.msra.mxu0 %v290
      %329 = vmatprep.subr.mxu0 0.0
      %330 = vmatpush1.msra.mxu0 %v289
      %331 = vmatprep.subr.mxu0 0.0
      %332 = vmatpush2.msra.mxu0 0.0
      %333 = vmatprep.subr.mxu0 0.0
      %334 = vmatpush2.msra.mxu0 0.0
      %335 = vmatprep.subr.mxu0 0.0
      %336 = vmatpush2.msra.mxu0 0.0
      %337 = vmatprep.subr.mxu0 0.0
      %338 = vmatpush2.msra.mxu0 0.0
      %339 = vmatprep.subr.mxu0 0.0
      %340 = vmatpush2.msra.mxu0 0.0
      %341 = vmatprep.subr.mxu0 0.0
      %342 = vmatpush2.msra.mxu0 0.0
      %343 = vmatprep.subr.mxu0 0.0
      %344 = vmatpush2.msra.mxu0 0.0
      %345 = vmatprep.subr.mxu0 0.0
      %346 = vmatpush2.msra.mxu0 0.0
      %347 = vmatprep.subr.mxu0 0.0
      %348 = vmatpush2.msra.mxu0 0.0
      %349 = vmatprep.subr.mxu0 0.0
      %350 = vmatpush2.msra.mxu0 0.0
      %351 = vmatprep.subr.mxu0 0.0
      %352 = vmatpush2.msra.mxu0 0.0
      %353 = vmatprep.subr.mxu0 0.0
      %354 = vmatpush2.msra.mxu0 0.0
      %355 = vmatprep.subr.mxu0 0.0
      %356 = vmatpush2.msra.mxu0 0.0
      %357 = vmatprep.subr.mxu0 0.0
      %358 = vmatpush2.msra.mxu0 0.0
      %359 = vmatprep.subr.mxu0 0.0
      %360 = vmatpush2.msra.mxu0 0.0
      %361 = vmatprep.subr.mxu0 0.0
      %362 = vmatpush2.msra.mxu0 0.0
      %363 = vmatprep.mubr.f32.mxu0 0.0
      %364 = vmatmul.mubr.f32.gmra.mxu0 %v294
      %v365 = vpop.f32.mrf.mxu0
      %v366 = vadd.f32 0.0, %v365
      %v367 = vpop.f32.mrf.mxu0
      %368 = vmatprep.mubr.f32.mxu0 0.0
      %369 = vmatmul.mubr.f32.gmra.mxu0 %v297
      %v370 = vpop.f32.mrf.mxu0
      %v371 = vadd.f32 0.0, %v370
      %v372 = vpop.f32.mrf.mxu0
      %373 = vdwg.mxu0
      %374 = vst.msk [vmem:[%s172] sm:$0xff] %vm286, %v366
      %375 = vst.msk [vmem:[%s172 + $0x8] sm:$0xff] %vm286, %v371
      %s376 = smul.u32 2, %s14
      %p377 = scmp.lt.s32.totalorder %s376, 3
      %s378 = scalar_select %p377, %s376, 3
      %s379 = smul.addr %s378, 8
      %s380 = scalar_lea.vmem %s3, %s379
      // Predicated region
      $region33: #{_lambda_.7} parent=31 // pred_check
        %p381 = pneg %p100
      $region34: #{_lambda_.7} parent=31 // pred_check_branch
        %383 = sbr.rel (%p381) target = $region36
      $region35: #{_lambda_.7} parent=31 // pred_region
        %s384 = smul.u32 2, %s14
      $region36: #{_lambda_.7} parent=31 // pred_fallthru
        _
    $region32: #{_lambda_.7} parent=5 // pred_fallthru
      _
    %p385 = scmp.le.s32.totalorder 2, %s9
    // Predicated region
    $region37: #{_lambda_.7} parent=5 // pred_check
      %p386 = pneg %p385
    $region38: #{_lambda_.7} parent=5 // pred_check_branch
      %388 = sbr.rel (%p386) target = $region40
    $region39: #{_lambda_.7} parent=5 // pred_region
      %s389 = ssub.s32 %s9, 2
      // Predicated region
      $region41: #{_lambda_.7} parent=39 // pred_check
        %p390 = pneg %p106
      $region42: #{_lambda_.7} parent=39 // pred_check_branch
        %392 = sbr.rel (%p390) target = $region44
      $region43: #{_lambda_.7} parent=39 // pred_region
        %s393 = smul.u32 2, %s15
        %p394 = scmp.lt.s32.totalorder %s393, 3
        %s395 = scalar_select %p394, %s393, 3
        %s396 = smul.addr %s395, 8
        %s397 = scalar_lea.vmem %s3, %s396
      $region44: #{_lambda_.7} parent=39 // pred_fallthru
        _
    $region40: #{_lambda_.7} parent=5 // pred_fallthru
      _
  $region6: #{_lambda_.7} parent=0 // loop_footer
    %s13 = sadd.s32 1, %s9
  $region7: #{_lambda_.7} parent=0 // loop_footer_branch
    %8 = sbr.rel target = $region3
  $region8: #{_lambda_.7} parent=0 // loop_exit
    _

// kernel: _lambda_.10
$region0: #{_lambda_.10}
  #allocation0 [shape = 'u32[]', space=smem, size = 0x4, offset = 0x4, fixed_abs, tag = 'smem constant byte address 0x4 - core index']
  #allocation1 [shape = 'u32[144,128]{1,0:T(1,128)}', space=vmem, size = 0x12000, scoped, tag = 'internal scratch']
  %s0 = inlined_call_operand.vmem [shape: f32[32,32], index: 0, kind: input, shape index: {}]
  %s1 = inlined_call_operand.vmem [shape: f32[32,32], index: 1, kind: input, shape index: {}]
  %s2 = inlined_call_operand.vmem [shape: f32[32,48], index: 2, kind: input, shape index: {}]
  %s3 = inlined_call_operand.vmem [shape: f32[32,48], index: 3, kind: output, shape index: {}]
  %s4 = sld [smem:[#allocation0]]
  $region45: #{_lambda_.10} parent=0
    _
  %s6 = ssub.s32 1, %s4
  %s7 = scalar_select 0, %s6, %s4
  loop: start=0, step=1, limit=4
  $region2: #{_lambda_.10} parent=0 // loop_pre_header
    _
  $region3: #{_lambda_.10} parent=0 // loop_header
    %s9 = sphi 0, %s13
    %p10 = scmp.ge.s32.totalorder %s9, 4
    %s19 = sphi 0, %s21
    %s22 = sphi 0, %s19
    %s23 = sphi 0, %s22
    %s39 = sphi 0, %s23
    %s43 = sphi 0, %s43
    %s45 = sphi 0, %s43
    %s46 = sphi 0, %s45
    %s60 = sphi 0, %s46
    %s64 = sphi 0, %s64
    %s66 = sphi 0, %s64
    %s67 = sphi 0, %s66
    %s81 = sphi 0, %s67
    %s87 = sphi 0, %s89
    %s90 = sphi 0, %s87
    %s91 = sphi 0, %s90
    %s107 = sphi 0, %s91
  $region4: #{_lambda_.10} parent=0 // loop_header_branch
    %12 = sbr.rel (%p10) target = $region8
  $region5: #{_lambda_.10} parent=0 // loop_body
    %s14 = ssub.s32 %s9, 1
    %s15 = ssub.s32 %s9, 2
    %s16 = sadd.s32 %s9, 1
    %s17 = ssub.s32 %s9, %s16
    %p18 = scmp.eq.s32.totalorder %s17, 0
    %s20 = sadd.s32 %s19, 1
    %s21 = scalar_select %p18, %s19, %s20
    %p24 = pneg %p18
    %p25 = scmp.eq.s32.totalorder %s9, 1
    %p26 = por %p24, %p25
    %p27 = scmp.ne.s32.totalorder %s19, %s22
    %p28 = scmp.eq.s32.totalorder %s9, 0
    %p29 = por %p27, %p28
    %p30 = scmp.ne.s32.totalorder %s19, %s22
    %p31 = scmp.eq.s32.totalorder %s14, 1
    %p32 = por %p30, %p31
    %p33 = scmp.ne.s32.totalorder %s22, %s23
    %p34 = scmp.eq.s32.totalorder %s14, 0
    %p35 = por %p33, %p34
    %p36 = scmp.ne.s32.totalorder %s22, %s23
    %p37 = scmp.eq.s32.totalorder %s15, 1
    %p38 = por %p36, %p37
    %p40 = scmp.ne.s32.totalorder %s23, %s39
    %p41 = scmp.eq.s32.totalorder %s15, 0
    %p42 = por %p40, %p41
    %s44 = sadd.s32 %s43, 1
    %p47 = scmp.eq.s32.totalorder %s9, 1
    %p48 = scmp.ne.s32.totalorder %s43, %s45
    %p49 = scmp.eq.s32.totalorder %s9, 0
    %p50 = por %p48, %p49
    %p51 = scmp.ne.s32.totalorder %s43, %s45
    %p52 = scmp.eq.s32.totalorder %s14, 1
    %p53 = por %p51, %p52
    %p54 = scmp.ne.s32.totalorder %s45, %s46
    %p55 = scmp.eq.s32.totalorder %s14, 0
    %p56 = por %p54, %p55
    %p57 = scmp.ne.s32.totalorder %s45, %s46
    %p58 = scmp.eq.s32.totalorder %s15, 1
    %p59 = por %p57, %p58
    %p61 = scmp.ne.s32.totalorder %s46, %s60
    %p62 = scmp.eq.s32.totalorder %s15, 0
    %p63 = por %p61, %p62
    %s65 = sadd.s32 %s64, 1
    %p68 = scmp.eq.s32.totalorder %s9, 1
    %p69 = scmp.ne.s32.totalorder %s64, %s66
    %p70 = scmp.eq.s32.totalorder %s9, 0
    %p71 = por %p69, %p70
    %p72 = scmp.ne.s32.totalorder %s64, %s66
    %p73 = scmp.eq.s32.totalorder %s14, 1
    %p74 = por %p72, %p73
    %p75 = scmp.ne.s32.totalorder %s66, %s67
    %p76 = scmp.eq.s32.totalorder %s14, 0
    %p77 = por %p75, %p76
    %p78 = scmp.ne.s32.totalorder %s66, %s67
    %p79 = scmp.eq.s32.totalorder %s15, 1
    %p80 = por %p78, %p79
    %p82 = scmp.ne.s32.totalorder %s67, %s81
    %p83 = scmp.eq.s32.totalorder %s15, 0
    %p84 = por %p82, %p83
    %s85 = ssub.s32 %s9, %s16
    %p86 = scmp.eq.s32.totalorder %s85, 0
    %s88 = sadd.s32 %s87, 1
    %s89 = scalar_select %p86, %s87, %s88
    %p92 = pneg %p86
    %p93 = scmp.eq.s32.totalorder %s9, 1
    %p94 = por %p92, %p93
    %p95 = scmp.ne.s32.totalorder %s87, %s90
    %p96 = scmp.eq.s32.totalorder %s9, 0
    %p97 = por %p95, %p96
    %p98 = scmp.ne.s32.totalorder %s87, %s90
    %p99 = scmp.eq.s32.totalorder %s14, 1
    %p100 = por %p98, %p99
    %p101 = scmp.ne.s32.totalorder %s90, %s91
    %p102 = scmp.eq.s32.totalorder %s14, 0
    %p103 = por %p101, %p102
    %p104 = scmp.ne.s32.totalorder %s90, %s91
    %p105 = scmp.eq.s32.totalorder %s15, 1
    %p106 = por %p104, %p105
    %p108 = scmp.ne.s32.totalorder %s91, %s107
    %p109 = scmp.eq.s32.totalorder %s15, 0
    %p110 = por %p108, %p109
    %p111 = scmp.le.s32.totalorder 1, %s9
    %p112 = scmp.lt.s32.totalorder %s9, 3
    %p113 = pnand %p111, %p112
    %p114 = pneg %p113
    // Predicated region
    $region9: #{_lambda_.10} parent=5 // pred_check
      _
    $region10: #{_lambda_.10} parent=5 // pred_check_branch
      %116 = sbr.rel (%p113) target = $region12
    $region11: #{_lambda_.10} parent=5 // pred_region
      %s117 = ssub.s32 %s9, 1
      // Predicated region
      $region13: #{_lambda_.10} parent=11 // pred_check
        %p118 = pneg %p56
      $region14: #{_lambda_.10} parent=11 // pred_check_branch
        %120 = sbr.rel (%p118) target = $region16
      $region15: #{_lambda_.10} parent=11 // pred_region
        _
      $region16: #{_lambda_.10} parent=11 // pred_fallthru
        _
      // Predicated region
      $region17: #{_lambda_.10} parent=11 // pred_check
        %p121 = pneg %p77
      $region18: #{_lambda_.10} parent=11 // pred_check_branch
        %123 = sbr.rel (%p121) target = $region20
      $region19: #{_lambda_.10} parent=11 // pred_region
        _
      $region20: #{_lambda_.10} parent=11 // pred_fallthru
        _
    $region12: #{_lambda_.10} parent=5 // pred_fallthru
      _
    %p124 = scmp.lt.s32.totalorder %s9, 2
    // Predicated region
    $region21: #{_lambda_.10} parent=5 // pred_check
      %p125 = pneg %p124
    $region22: #{_lambda_.10} parent=5 // pred_check_branch
      %127 = sbr.rel (%p125) target = $region24
    $region23: #{_lambda_.10} parent=5 // pred_region
      // Predicated region
      $region25: #{_lambda_.10} parent=23 // pred_check
        %p128 = pneg %p29
      $region26: #{_lambda_.10} parent=23 // pred_check_branch
        %130 = sbr.rel (%p128) target = $region28
      $region27: #{_lambda_.10} parent=23 // pred_region
        %s131 = smul.u32 2, %s9
        %p132 = scmp.lt.s32.totalorder %s131, 3
        %s133 = scalar_select %p132, %s131, 3
        %s134 = smul.addr %s133, 8
        %s135 = scalar_lea.vmem %s0, %s134
        %s136 = smul.u32 2, %s9
      $region28: #{_lambda_.10} parent=23 // pred_fallthru
        _
    $region24: #{_lambda_.10} parent=5 // pred_fallthru
      _
    %p137 = scmp.le.s32.totalorder 1, %s9
    %p138 = scmp.lt.s32.totalorder %s9, 3
    %p139 = pnand %p137, %p138
    %p140 = pneg %p139
    // Predicated region
    $region29: #{_lambda_.10} parent=5 // pred_check
      _
    $region30: #{_lambda_.10} parent=5 // pred_check_branch
      %142 = sbr.rel (%p139) target = $region32
    $region31: #{_lambda_.10} parent=5 // pred_region
      %s143 = ssub.s32 %s9, 1
      %s144 = smul.u32 2, %s14
      %p145 = scmp.lt.s32.totalorder %s144, 3
      %s146 = scalar_select %p145, %s144, 3
      %s147 = smul.addr %s146, 8
      %s148 = scalar_lea.vmem %s0, %s147
      %p149 = pneg %p35
      %p150 = pneg %p32
      %p151 = pneg %p56
      %p152 = pneg %p53
      %p153 = pneg %p77
      %p154 = pneg %p74
      %p155 = pneg %p103
      %p156 = pneg %p100
      %s157 = smul.u32 2, %s14
      %p158 = scmp.lt.s32.totalorder %s157, 3
      %s159 = scalar_select %p158, %s157, 3
      %s160 = smul.addr %s159, 8
      %s161 = scalar_lea.vmem %s3, %s160
      %s162 = smul.u32 2, %s14
      %p163 = scmp.lt.s32.totalorder %s162, 3
      %s164 = scalar_select %p163, %s162, 3
      %s165 = smul.addr %s164, 8
      %s166 = scalar_lea.vmem %s0, %s165
      %s167 = smul.u32 2, %s14
      %s168 = smul.u32 2, %s14
      %p169 = scmp.lt.s32.totalorder %s168, 3
      %s170 = scalar_select %p169, %s168, 3
      %s171 = smul.addr %s170, 8
      %s172 = scalar_lea.vmem %s3, %s171
      %s173 = smul.u32 2, %s14
      %v174 = vld [vmem:[%s166] sm:$0xff]
      %v175 = vld [vmem:[%s166 + $0x8] sm:$0xff]
      %v176 = vld [vmem:[%s1] sm:$0xff]
      %v177 = vld [vmem:[%s1 + $0x8] sm:$0xff]
      %v178 = vld [vmem:[%s1 + $0x10] sm:$0xff]
      %v179 = vld [vmem:[%s1 + $0x18] sm:$0xff]
      %vm180 = vcmask 261120
      %v182 = vsel %vm180, %v174, 0
      %v185 = vsel %vm180, %v175, 0
      %187 = vmatprep.subr.mxu0 0.0
      %188 = vmatpush1.msra.mxu0 0.0
      %189 = vmatprep.subr.mxu0 0.0
      %190 = vmatpush1.msra.mxu0 0.0
      %191 = vmatprep.subr.mxu0 0.0
      %192 = vmatpush1.msra.mxu0 0.0
      %193 = vmatprep.subr.mxu0 0.0
      %194 = vmatpush1.msra.mxu0 0.0
      %195 = vmatprep.subr.mxu0 0.0
      %196 = vmatpush1.msra.mxu0 0.0
      %197 = vmatprep.subr.mxu0 0.0
      %198 = vmatpush1.msra.mxu0 0.0
      %199 = vmatprep.subr.mxu0 0.0
      %200 = vmatpush1.msra.mxu0 0.0
      %201 = vmatprep.subr.mxu0 0.0
      %202 = vmatpush1.msra.mxu0 0.0
      %203 = vmatprep.subr.mxu0 0.0
      %204 = vmatpush1.msra.mxu0 0.0
      %205 = vmatprep.subr.mxu0 0.0
      %206 = vmatpush1.msra.mxu0 0.0
      %207 = vmatprep.subr.mxu0 0.0
      %208 = vmatpush1.msra.mxu0 0.0
      %209 = vmatprep.subr.mxu0 0.0
      %210 = vmatpush1.msra.mxu0 0.0
      %211 = vmatprep.subr.mxu0 0.0
      %212 = vmatpush1.msra.mxu0 %v179
      %213 = vmatprep.subr.mxu0 0.0
      %214 = vmatpush1.msra.mxu0 %v178
      %215 = vmatprep.subr.mxu0 0.0
      %216 = vmatpush1.msra.mxu0 %v177
      %217 = vmatprep.subr.mxu0 0.0
      %218 = vmatpush1.msra.mxu0 %v176
      %219 = vmatprep.subr.mxu0 0.0
      %220 = vmatpush2.msra.mxu0 0.0
      %221 = vmatprep.subr.mxu0 0.0
      %222 = vmatpush2.msra.mxu0 0.0
      %223 = vmatprep.subr.mxu0 0.0
      %224 = vmatpush2.msra.mxu0 0.0
      %225 = vmatprep.subr.mxu0 0.0
      %226 = vmatpush2.msra.mxu0 0.0
      %227 = vmatprep.subr.mxu0 0.0
      %228 = vmatpush2.msra.mxu0 0.0
      %229 = vmatprep.subr.mxu0 0.0
      %230 = vmatpush2.msra.mxu0 0.0
      %231 = vmatprep.subr.mxu0 0.0
      %232 = vmatpush2.msra.mxu0 0.0
      %233 = vmatprep.subr.mxu0 0.0
      %234 = vmatpush2.msra.mxu0 0.0
      %235 = vmatprep.subr.mxu0 0.0
      %236 = vmatpush2.msra.mxu0 0.0
      %237 = vmatprep.subr.mxu0 0.0
      %238 = vmatpush2.msra.mxu0 0.0
      %239 = vmatprep.subr.mxu0 0.0
      %240 = vmatpush2.msra.mxu0 0.0
      %241 = vmatprep.subr.mxu0 0.0
      %242 = vmatpush2.msra.mxu0 0.0
      %243 = vmatprep.subr.mxu0 0.0
      %244 = vmatpush2.msra.mxu0 0.0
      %245 = vmatprep.subr.mxu0 0.0
      %246 = vmatpush2.msra.mxu0 0.0
      %247 = vmatprep.subr.mxu0 0.0
      %248 = vmatpush2.msra.mxu0 0.0
      %249 = vmatprep.subr.mxu0 0.0
      %250 = vmatpush2.msra.mxu0 0.0
      %251 = vmatprep.mubr.f32.mxu0 0.0
      %252 = vmatmul.mubr.f32.gmra.mxu0 %v182
      %v253 = vpop.f32.mrf.mxu0
      %v254 = vadd.f32 0.0, %v253
      %v255 = vpop.f32.mrf.mxu0
      %256 = vmatprep.mubr.f32.mxu0 0.0
      %257 = vmatmul.mubr.f32.gmra.mxu0 %v185
      %v258 = vpop.f32.mrf.mxu0
      %v259 = vadd.f32 0.0, %v258
      %v260 = vpop.f32.mrf.mxu0
      %261 = vdwg.mxu0
      %v262 = vtanh.pop %v254
      %v263 = vtanh.pop %v259
      %v264 = vxor.u32 %v254, 2147483648
      %v265 = vxor.u32 %v259, 2147483648
      %v266 = vmul.f32 %v264, 1.442695
      %v267 = vpow.pop %v266
      %v268 = vmul.f32 %v265, 1.442695
      %v269 = vpow.pop %v268
      %v270 = vadd.f32 %v267, 1.0
      %v271 = vadd.f32 %v269, 1.0
      %v272 = vrcp.pop %v270
      %v273 = vmul.f32 1.0, %v272
      %v274 = vrcp.pop %v271
      %v275 = vmul.f32 1.0, %v274
      %278 = vrot.lane.b32.xlu0 %v273, 112
      %v279 = vpop.permute.xlu0 %278
      %280 = vrot.lane.b32.xlu0 %v275, 112
      %v281 = vpop.permute.xlu0 %280
      %v284 = vmul.f32 %v262, %v279
      %v285 = vmul.f32 %v263, %v281
      %vm286 = vcmask 130048
      %v287 = vsel %vm286, %v284, %v174
      %v288 = vsel %vm286, %v285, %v175
      %v289 = vld [vmem:[%s2] sm:$0xff]
      %v290 = vld [vmem:[%s2 + $0x8] sm:$0xff]
      %v291 = vld [vmem:[%s2 + $0x10] sm:$0xff]
      %v292 = vld [vmem:[%s2 + $0x18] sm:$0xff]
      %v294 = vsel %vm180, %v287, 0
      %v297 = vsel %vm180, %v288, 0
      %299 = vmatprep.subr.mxu0 0.0
      %300 = vmatpush1.msra.mxu0 0.0
      %301 = vmatprep.subr.mxu0 0.0
      %302 = vmatpush1.msra.mxu0 0.0
      %303 = vmatprep.subr.mxu0 0.0
      %304 = vmatpush1.msra.mxu0 0.0
      %305 = vmatprep.subr.mxu0 0.0
      %306 = vmatpush1.msra.mxu0 0.0
      %307 = vmatprep.subr.mxu0 0.0
      %308 = vmatpush1.msra.mxu0 0.0
      %309 = vmatprep.subr.mxu0 0.0
      %310 = vmatpush1.msra.mxu0 0.0
      %311 = vmatprep.subr.mxu0 0.0
      %312 = vmatpush1.msra.mxu0 0.0
      %313 = vmatprep.subr.mxu0 0.0
      %314 = vmatpush1.msra.mxu0 0.0
      %315 = vmatprep.subr.mxu0 0.0
      %316 = vmatpush1.msra.mxu0 0.0
      %317 = vmatprep.subr.mxu0 0.0
      %318 = vmatpush1.msra.mxu0 0.0
      %319 = vmatprep.subr.mxu0 0.0
      %320 = vmatpush1.msra.mxu0 0.0
      %321 = vmatprep.subr.mxu0 0.0
      %322 = vmatpush1.msra.mxu0 0.0
      %323 = vmatprep.subr.mxu0 0.0
      %324 = vmatpush1.msra.mxu0 %v292
      %325 = vmatprep.subr.mxu0 0.0
      %326 = vmatpush1.msra.mxu0 %v291
      %327 = vmatprep.subr.mxu0 0.0
      %328 = vmatpush1.msra.mxu0 %v290
      %329 = vmatprep.subr.mxu0 0.0
      %330 = vmatpush1.msra.mxu0 %v289
      %331 = vmatprep.subr.mxu0 0.0
      %332 = vmatpush2.msra.mxu0 0.0
      %333 = vmatprep.subr.mxu0 0.0
      %334 = vmatpush2.msra.mxu0 0.0
      %335 = vmatprep.subr.mxu0 0.0
      %336 = vmatpush2.msra.mxu0 0.0
      %337 = vmatprep.subr.mxu0 0.0
      %338 = vmatpush2.msra.mxu0 0.0
      %339 = vmatprep.subr.mxu0 0.0
      %340 = vmatpush2.msra.mxu0 0.0
      %341 = vmatprep.subr.mxu0 0.0
      %342 = vmatpush2.msra.mxu0 0.0
      %343 = vmatprep.subr.mxu0 0.0
      %344 = vmatpush2.msra.mxu0 0.0
      %345 = vmatprep.subr.mxu0 0.0
      %346 = vmatpush2.msra.mxu0 0.0
      %347 = vmatprep.subr.mxu0 0.0
      %348 = vmatpush2.msra.mxu0 0.0
      %349 = vmatprep.subr.mxu0 0.0
      %350 = vmatpush2.msra.mxu0 0.0
      %351 = vmatprep.subr.mxu0 0.0
      %352 = vmatpush2.msra.mxu0 0.0
      %353 = vmatprep.subr.mxu0 0.0
      %354 = vmatpush2.msra.mxu0 0.0
      %355 = vmatprep.subr.mxu0 0.0
      %356 = vmatpush2.msra.mxu0 0.0
      %357 = vmatprep.subr.mxu0 0.0
      %358 = vmatpush2.msra.mxu0 0.0
      %359 = vmatprep.subr.mxu0 0.0
      %360 = vmatpush2.msra.mxu0 0.0
      %361 = vmatprep.subr.mxu0 0.0
      %362 = vmatpush2.msra.mxu0 0.0
      %363 = vmatprep.mubr.f32.mxu0 0.0
      %364 = vmatmul.mubr.f32.gmra.mxu0 %v294
      %v365 = vpop.f32.mrf.mxu0
      %v366 = vadd.f32 0.0, %v365
      %v367 = vpop.f32.mrf.mxu0
      %368 = vmatprep.mubr.f32.mxu0 0.0
      %369 = vmatmul.mubr.f32.gmra.mxu0 %v297
      %v370 = vpop.f32.mrf.mxu0
      %v371 = vadd.f32 0.0, %v370
      %v372 = vpop.f32.mrf.mxu0
      %373 = vdwg.mxu0
      %vm374 = vcmask 392192
      %375 = vst.msk [vmem:[%s172] sm:$0xff] %vm374, %v366
      %376 = vst.msk [vmem:[%s172 + $0x8] sm:$0xff] %vm374, %v371
      %s377 = smul.u32 2, %s14
      %p378 = scmp.lt.s32.totalorder %s377, 3
      %s379 = scalar_select %p378, %s377, 3
      %s380 = smul.addr %s379, 8
      %s381 = scalar_lea.vmem %s3, %s380
      // Predicated region
      $region33: #{_lambda_.10} parent=31 // pred_check
        %p382 = pneg %p100
      $region34: #{_lambda_.10} parent=31 // pred_check_branch
        %384 = sbr.rel (%p382) target = $region36
      $region35: #{_lambda_.10} parent=31 // pred_region
        %s385 = smul.u32 2, %s14
      $region36: #{_lambda_.10} parent=31 // pred_fallthru
        _
    $region32: #{_lambda_.10} parent=5 // pred_fallthru
      _
    %p386 = scmp.le.s32.totalorder 2, %s9
    // Predicated region
    $region37: #{_lambda_.10} parent=5 // pred_check
      %p387 = pneg %p386
    $region38: #{_lambda_.10} parent=5 // pred_check_branch
      %389 = sbr.rel (%p387) target = $region40
    $region39: #{_lambda_.10} parent=5 // pred_region
      %s390 = ssub.s32 %s9, 2
      // Predicated region
      $region41: #{_lambda_.10} parent=39 // pred_check
        %p391 = pneg %p106
      $region42: #{_lambda_.10} parent=39 // pred_check_branch
        %393 = sbr.rel (%p391) target = $region44
      $region43: #{_lambda_.10} parent=39 // pred_region
        %s394 = smul.u32 2, %s15
        %p395 = scmp.lt.s32.totalorder %s394, 3
        %s396 = scalar_select %p395, %s394, 3
        %s397 = smul.addr %s396, 8
        %s398 = scalar_lea.vmem %s3, %s397
      $region44: #{_lambda_.10} parent=39 // pred_fallthru
        _
    $region40: #{_lambda_.10} parent=5 // pred_fallthru
      _
  $region6: #{_lambda_.10} parent=0 // loop_footer
    %s13 = sadd.s32 1, %s9
  $region7: #{_lambda_.10} parent=0 // loop_footer_branch
    %8 = sbr.rel target = $region3
  $region8: #{_lambda_.10} parent=0 // loop_exit
    _

// kernel: _lambda_.11
$region0: #{_lambda_.11}
  #allocation0 [shape = 'u32[]', space=smem, size = 0x4, offset = 0x4, fixed_abs, tag = 'smem constant byte address 0x4 - core index']
  #allocation1 [shape = 'u32[144,128]{1,0:T(1,128)}', space=vmem, size = 0x12000, scoped, tag = 'internal scratch']
  %s0 = inlined_call_operand.vmem [shape: f32[8,32], index: 0, kind: input, shape index: {}]
  %s1 = inlined_call_operand.vmem [shape: f32[32,32], index: 1, kind: input, shape index: {}]
  %s2 = inlined_call_operand.vmem [shape: f32[1,32], index: 2, kind: input, shape index: {}]
  %s3 = inlined_call_operand.vmem [shape: f32[32,32], index: 3, kind: input, shape index: {}]
  %s4 = inlined_call_operand.vmem [shape: f32[1,32], index: 4, kind: input, shape index: {}]
  %s5 = inlined_call_operand.vmem [shape: f32[8,32], index: 5, kind: output, shape index: {}]
  %s6 = sld [smem:[#allocation0]]
  $region30: #{_lambda_.11} parent=0
    _
  %s8 = ssub.s32 1, %s6
  %s9 = scalar_select 0, %s8, %s6
  // Predicated region
  $region2: #{_lambda_.11} parent=0 // pred_check
    _
  $region3: #{_lambda_.11} parent=0 // pred_check_branch
    %11 = sbr.rel (0) target = $region5
  $region4: #{_lambda_.11} parent=0 // pred_region
    _
  $region5: #{_lambda_.11} parent=0 // pred_fallthru
    _
  // Predicated region
  $region6: #{_lambda_.11} parent=0 // pred_check
    _
  $region7: #{_lambda_.11} parent=0 // pred_check_branch
    %13 = sbr.rel (0) target = $region9
  $region8: #{_lambda_.11} parent=0 // pred_region
    _
  $region9: #{_lambda_.11} parent=0 // pred_fallthru
    _
  // Predicated region
  $region10: #{_lambda_.11} parent=0 // pred_check
    _
  $region11: #{_lambda_.11} parent=0 // pred_check_branch
    %15 = sbr.rel (0) target = $region13
  $region12: #{_lambda_.11} parent=0 // pred_region
    _
  $region13: #{_lambda_.11} parent=0 // pred_fallthru
    _
  // Predicated region
  $region14: #{_lambda_.11} parent=0 // pred_check
    _
  $region15: #{_lambda_.11} parent=0 // pred_check_branch
    %17 = sbr.rel (0) target = $region17
  $region16: #{_lambda_.11} parent=0 // pred_region
    _
  $region17: #{_lambda_.11} parent=0 // pred_fallthru
    _
  // Predicated region
  $region18: #{_lambda_.11} parent=0 // pred_check
    _
  $region19: #{_lambda_.11} parent=0 // pred_check_branch
    %19 = sbr.rel (0) target = $region21
  $region20: #{_lambda_.11} parent=0 // pred_region
    _
  $region21: #{_lambda_.11} parent=0 // pred_fallthru
    _
  %v20 = vld [vmem:[%s0] sm:$0xff]
  %v21 = vmax.f32 %v20, 0.0
  %v22 = vld [vmem:[%s1] sm:$0xff]
  %v23 = vld [vmem:[%s1 + $0x8] sm:$0xff]
  %v24 = vld [vmem:[%s1 + $0x10] sm:$0xff]
  %v25 = vld [vmem:[%s1 + $0x18] sm:$0xff]
  %v26 = vld [vmem:[%s2] sm:$0x1]
  %v28 = vlaneseq
  %v29 = vshrl.u32 %v28, 7
  %v30 = vsub.s32 0, %v29
  %v31 = vrot.slane %v26, %v30
  %vm33 = vcmask 261120
  %v35 = vsel %vm33, %v21, 0
  %37 = vmatprep.subr.mxu0 0.0
  %38 = vmatpush1.msra.mxu0 0.0
  %39 = vmatprep.subr.mxu0 0.0
  %40 = vmatpush1.msra.mxu0 0.0
  %41 = vmatprep.subr.mxu0 0.0
  %42 = vmatpush1.msra.mxu0 0.0
  %43 = vmatprep.subr.mxu0 0.0
  %44 = vmatpush1.msra.mxu0 0.0
  %45 = vmatprep.subr.mxu0 0.0
  %46 = vmatpush1.msra.mxu0 0.0
  %47 = vmatprep.subr.mxu0 0.0
  %48 = vmatpush1.msra.mxu0 0.0
  %49 = vmatprep.subr.mxu0 0.0
  %50 = vmatpush1.msra.mxu0 0.0
  %51 = vmatprep.subr.mxu0 0.0
  %52 = vmatpush1.msra.mxu0 0.0
  %53 = vmatprep.subr.mxu0 0.0
  %54 = vmatpush1.msra.mxu0 0.0
  %55 = vmatprep.subr.mxu0 0.0
  %56 = vmatpush1.msra.mxu0 0.0
  %57 = vmatprep.subr.mxu0 0.0
  %58 = vmatpush1.msra.mxu0 0.0
  %59 = vmatprep.subr.mxu0 0.0
  %60 = vmatpush1.msra.mxu0 0.0
  %61 = vmatprep.subr.mxu0 0.0
  %62 = vmatpush1.msra.mxu0 %v25
  %63 = vmatprep.subr.mxu0 0.0
  %64 = vmatpush1.msra.mxu0 %v24
  %65 = vmatprep.subr.mxu0 0.0
  %66 = vmatpush1.msra.mxu0 %v23
  %67 = vmatprep.subr.mxu0 0.0
  %68 = vmatpush1.msra.mxu0 %v22
  %69 = vmatprep.subr.mxu0 0.0
  %70 = vmatpush2.msra.mxu0 0.0
  %71 = vmatprep.subr.mxu0 0.0
  %72 = vmatpush2.msra.mxu0 0.0
  %73 = vmatprep.subr.mxu0 0.0
  %74 = vmatpush2.msra.mxu0 0.0
  %75 = vmatprep.subr.mxu0 0.0
  %76 = vmatpush2.msra.mxu0 0.0
  %77 = vmatprep.subr.mxu0 0.0
  %78 = vmatpush2.msra.mxu0 0.0
  %79 = vmatprep.subr.mxu0 0.0
  %80 = vmatpush2.msra.mxu0 0.0
  %81 = vmatprep.subr.mxu0 0.0
  %82 = vmatpush2.msra.mxu0 0.0
  %83 = vmatprep.subr.mxu0 0.0
  %84 = vmatpush2.msra.mxu0 0.0
  %85 = vmatprep.subr.mxu0 0.0
  %86 = vmatpush2.msra.mxu0 0.0
  %87 = vmatprep.subr.mxu0 0.0
  %88 = vmatpush2.msra.mxu0 0.0
  %89 = vmatprep.subr.mxu0 0.0
  %90 = vmatpush2.msra.mxu0 0.0
  %91 = vmatprep.subr.mxu0 0.0
  %92 = vmatpush2.msra.mxu0 0.0
  %93 = vmatprep.subr.mxu0 0.0
  %94 = vmatpush2.msra.mxu0 0.0
  %95 = vmatprep.subr.mxu0 0.0
  %96 = vmatpush2.msra.mxu0 0.0
  %97 = vmatprep.subr.mxu0 0.0
  %98 = vmatpush2.msra.mxu0 0.0
  %99 = vmatprep.subr.mxu0 0.0
  %100 = vmatpush2.msra.mxu0 0.0
  %101 = vmatprep.mubr.f32.mxu0 0.0
  %102 = vmatmul.mubr.f32.gmra.mxu0 %v35
  %v103 = vpop.f32.mrf.mxu0
  %v104 = vadd.f32 %v31, %v103
  %v105 = vpop.f32.mrf.mxu0
  %106 = vdwg.mxu0
  %v107 = vmax.f32 %v104, 0.0
  %v108 = vld [vmem:[%s3] sm:$0xff]
  %v109 = vld [vmem:[%s3 + $0x8] sm:$0xff]
  %v110 = vld [vmem:[%s3 + $0x10] sm:$0xff]
  %v111 = vld [vmem:[%s3 + $0x18] sm:$0xff]
  %v112 = vld [vmem:[%s4] sm:$0x1]
  %v114 = vlaneseq
  %v115 = vshrl.u32 %v114, 7
  %v116 = vsub.s32 0, %v115
  %v117 = vrot.slane %v112, %v116
  %v120 = vsel %vm33, %v107, 0
  %122 = vmatprep.subr.mxu0 0.0
  %123 = vmatpush1.msra.mxu0 0.0
  %124 = vmatprep.subr.mxu0 0.0
  %125 = vmatpush1.msra.mxu0 0.0
  %126 = vmatprep.subr.mxu0 0.0
  %127 = vmatpush1.msra.mxu0 0.0
  %128 = vmatprep.subr.mxu0 0.0
  %129 = vmatpush1.msra.mxu0 0.0
  %130 = vmatprep.subr.mxu0 0.0
  %131 = vmatpush1.msra.mxu0 0.0
  %132 = vmatprep.subr.mxu0 0.0
  %133 = vmatpush1.msra.mxu0 0.0
  %134 = vmatprep.subr.mxu0 0.0
  %135 = vmatpush1.msra.mxu0 0.0
  %136 = vmatprep.subr.mxu0 0.0
  %137 = vmatpush1.msra.mxu0 0.0
  %138 = vmatprep.subr.mxu0 0.0
  %139 = vmatpush1.msra.mxu0 0.0
  %140 = vmatprep.subr.mxu0 0.0
  %141 = vmatpush1.msra.mxu0 0.0
  %142 = vmatprep.subr.mxu0 0.0
  %143 = vmatpush1.msra.mxu0 0.0
  %144 = vmatprep.subr.mxu0 0.0
  %145 = vmatpush1.msra.mxu0 0.0
  %146 = vmatprep.subr.mxu0 0.0
  %147 = vmatpush1.msra.mxu0 %v111
  %148 = vmatprep.subr.mxu0 0.0
  %149 = vmatpush1.msra.mxu0 %v110
  %150 = vmatprep.subr.mxu0 0.0
  %151 = vmatpush1.msra.mxu0 %v109
  %152 = vmatprep.subr.mxu0 0.0
  %153 = vmatpush1.msra.mxu0 %v108
  %154 = vmatprep.subr.mxu0 0.0
  %155 = vmatpush2.msra.mxu0 0.0
  %156 = vmatprep.subr.mxu0 0.0
  %157 = vmatpush2.msra.mxu0 0.0
  %158 = vmatprep.subr.mxu0 0.0
  %159 = vmatpush2.msra.mxu0 0.0
  %160 = vmatprep.subr.mxu0 0.0
  %161 = vmatpush2.msra.mxu0 0.0
  %162 = vmatprep.subr.mxu0 0.0
  %163 = vmatpush2.msra.mxu0 0.0
  %164 = vmatprep.subr.mxu0 0.0
  %165 = vmatpush2.msra.mxu0 0.0
  %166 = vmatprep.subr.mxu0 0.0
  %167 = vmatpush2.msra.mxu0 0.0
  %168 = vmatprep.subr.mxu0 0.0
  %169 = vmatpush2.msra.mxu0 0.0
  %170 = vmatprep.subr.mxu0 0.0
  %171 = vmatpush2.msra.mxu0 0.0
  %172 = vmatprep.subr.mxu0 0.0
  %173 = vmatpush2.msra.mxu0 0.0
  %174 = vmatprep.subr.mxu0 0.0
  %175 = vmatpush2.msra.mxu0 0.0
  %176 = vmatprep.subr.mxu0 0.0
  %177 = vmatpush2.msra.mxu0 0.0
  %178 = vmatprep.subr.mxu0 0.0
  %179 = vmatpush2.msra.mxu0 0.0
  %180 = vmatprep.subr.mxu0 0.0
  %181 = vmatpush2.msra.mxu0 0.0
  %182 = vmatprep.subr.mxu0 0.0
  %183 = vmatpush2.msra.mxu0 0.0
  %184 = vmatprep.subr.mxu0 0.0
  %185 = vmatpush2.msra.mxu0 0.0
  %186 = vmatprep.mubr.f32.mxu0 0.0
  %187 = vmatmul.mubr.f32.gmra.mxu0 %v120
  %v188 = vpop.f32.mrf.mxu0
  %v189 = vadd.f32 %v117, %v188
  %v190 = vpop.f32.mrf.mxu0
  %191 = vdwg.mxu0
  %192 = vst.msk [vmem:[%s5] sm:$0xff] %vm33, %v189
  // Predicated region
  $region22: #{_lambda_.11} parent=0 // pred_check
    _
  $region23: #{_lambda_.11} parent=0 // pred_check_branch
    %194 = sbr.rel (0) target = $region25
  $region24: #{_lambda_.11} parent=0 // pred_region
    _
  $region25: #{_lambda_.11} parent=0 // pred_fallthru
    _
  // Predicated region
  $region26: #{_lambda_.11} parent=0 // pred_check
    _
  $region27: #{_lambda_.11} parent=0 // pred_check_branch
    %196 = sbr.rel (0) target = $region29
  $region28: #{_lambda_.11} parent=0 // pred_region
    _
  $region29: #{_lambda_.11} parent=0 // pred_fallthru
    _

</llo_original>
